<compile_context>
chip_gen: v7x
topology: tpu7x:2x2x1
jax: 0.10.0
libtpu: 0.0.40
codegen_flags: <defaults>
</compile_context>

<pallas_src>
import functools

import jax
import jax.numpy as jnp
import numpy as np
from jax.experimental import pallas as pl
from jax.experimental.pallas import tpu as pltpu


def _filter_embedding_kernel(scale_ref, xt_ref, xf_ref,
                             wt_ref, bt_ref, wf_ref, bf_ref,
                             o_ref, *, n_scaling, n_table, n_filter_col, n_embd):
    tb = o_ref.shape[0]                                   # static block batch

    # Rows [0 : S) : passthrough copy of scaling_output for this batch block.
    o_ref[:, 0:n_scaling, :] = scale_ref[...].astype(o_ref.dtype)

    # Rows [S : S + n_table) : all table slices of all TB batch elements in a
    # single MXU matmul (M = TB * n_table). The reshape is a free sublane-major
    # merge since n_table is a multiple of 8.
    xt = xt_ref[...].reshape(tb * n_table, xt_ref.shape[-1])
    t = jnp.dot(xt, wt_ref[...], preferred_element_type=jnp.float32)
    t = t + bt_ref[...]                                   # bias add in f32
    o_ref[:, n_scaling:n_scaling + n_table, :] = (
        t.reshape(tb, n_table, n_embd).astype(o_ref.dtype))

    # Rows [S + n_table : S + n_table + n_filter_col) : all filter slices,
    # also one batched matmul (M = TB * n_filter_col).
    xf = xf_ref[...].reshape(tb * n_filter_col, xf_ref.shape[-1])
    f = jnp.dot(xf, wf_ref[...], preferred_element_type=jnp.float32)
    f = f + bf_ref[...]
    end = n_scaling + n_table + n_filter_col
    o_ref[:, n_scaling + n_table:end, :] = (
        f.reshape(tb, n_filter_col, n_embd).astype(o_ref.dtype))


def _const_spec(shape):
    nd = len(shape)
    return pl.BlockSpec(shape, lambda b, _nd=nd: (0,) * _nd)


def filter_embedding_forward(scaling_output, x, params, *,
                             n_join_col, n_fanout, n_table, n_filter_col,
                             hist_dim, table_dim, filter_dim,
                             block_b=128, compute_dtype=jnp.bfloat16):
    B, S, E = scaling_output.shape
    bias1 = (n_join_col + n_fanout) * hist_dim
    bias2 = bias1 + n_table * table_dim

    # Layout plumbing: present the table / filter regions as dense (B, rows, K)
    # matmul operands, pre-cast to bf16. allow_input_fusion below lets XLA fold
    # these slice/reshape/convert producers into the pallas_call operand reads.
    x_table = jax.lax.slice_in_dim(x, bias1, bias2, axis=1)
    x_table = x_table.reshape(B, n_table, table_dim).astype(compute_dtype)
    x_filter = jax.lax.slice_in_dim(
        x, bias2, bias2 + n_filter_col * filter_dim, axis=1)
    x_filter = x_filter.reshape(B, n_filter_col, filter_dim).astype(compute_dtype)

    wt = params["wt"].astype(compute_dtype)
    wf = params["wf"].astype(compute_dtype)
    bt = params["bt"].astype(jnp.float32)    # biases stay f32 (f32 bias add)
    bf = params["bf"].astype(jnp.float32)

    total_rows = S + n_table + n_filter_col
    tb = min(block_b, B)
    grid = (pl.cdiv(B, tb),)

    kernel = functools.partial(
        _filter_embedding_kernel,
        n_scaling=S, n_table=n_table, n_filter_col=n_filter_col, n_embd=E)

    return pl.pallas_call(
        kernel,
        out_shape=jax.ShapeDtypeStruct((B, total_rows, E), scaling_output.dtype),
        grid_spec=pltpu.PrefetchScalarGridSpec(
            num_scalar_prefetch=0,
            grid=grid,
            in_specs=[
                pl.BlockSpec((tb, S, E), lambda b: (b, 0, 0)),                   # scaling_output
                pl.BlockSpec((tb, n_table, table_dim), lambda b: (b, 0, 0)),     # table region
                pl.BlockSpec((tb, n_filter_col, filter_dim), lambda b: (b, 0, 0)),  # filter region
                _const_spec(wt.shape),   # grid-invariant weights: no re-DMA
                _const_spec(bt.shape),
                _const_spec(wf.shape),
                _const_spec(bf.shape),
            ],
            out_specs=pl.BlockSpec((tb, total_rows, E), lambda b: (b, 0, 0)),
        ),
        compiler_params=pltpu.CompilerParams(
            dimension_semantics=("parallel",),
            vmem_limit_bytes=32 * 1024 * 1024,
            allow_input_fusion=[False, True, True, False, False, False, False],
        ),
    )(scaling_output, x_table, x_filter, wt, bt, wf, bf)


def init_params(key, table_dim, filter_dim, n_embd):
    ks = jax.random.split(key, 4)
    s = 0.1
    # Weights stored pre-transposed (in_dim, out_dim) so y = x @ W + b,
    # equivalent to nn.Linear's x @ W.T + b.
    return {
        "wt": jax.random.normal(ks[0], (table_dim, n_embd), jnp.float32) * s,
        "bt": jax.random.normal(ks[1], (1, n_embd), jnp.float32) * s,
        "wf": jax.random.normal(ks[2], (filter_dim, n_embd), jnp.float32) * s,
        "bf": jax.random.normal(ks[3], (1, n_embd), jnp.float32) * s,
    }


def filter_embedding_reference(scaling_output, x, params, *,
                               n_join_col, n_fanout, n_table, n_filter_col,
                               hist_dim, table_dim, filter_dim):
    # Pure-JAX f32 reference mirroring the PyTorch forward loop-by-loop.
    embs = []
    bias = n_join_col * hist_dim + n_fanout * hist_dim
    for i in range(n_table):
        begin, end = bias + i * table_dim, bias + (i + 1) * table_dim
        embs.append(x[:, begin:end] @ params["wt"] + params["bt"][0])
    bias = n_join_col * hist_dim + n_fanout * hist_dim + n_table * table_dim
    for i in range(n_filter_col):
        begin, end = bias + i * filter_dim, bias + (i + 1) * filter_dim
        embs.append(x[:, begin:end] @ params["wf"] + params["bf"][0])
    stacked = jnp.stack(embs, axis=1)            # (B, n_table + n_filter_col, n_embd)
    return jnp.concatenate([scaling_output, stacked], axis=1)


if __name__ == "__main__":
    # Deterministic test shapes. n_embd = 128 keeps the output lane-dense;
    # S / n_table / n_filter_col are multiples of 8 so the three row-range
    # stores stay sublane-aligned (unmasked vst). block_b=32 with B=64 gives a
    # grid of 2 parallel steps (both v7x TensorCores busy) while still running
    # batched M = 256 / 512 row matmuls per step.
    B = 64
    n_join_col, n_fanout, hist_dim = 2, 2, 10
    n_table, table_dim = 8, 24
    n_filter_col, filter_dim = 16, 16
    n_embd = 128
    S = 8                                              # scaling_output sequence length
    block_b = 32

    x_width = (n_join_col + n_fanout) * hist_dim + n_table * table_dim \
        + n_filter_col * filter_dim                    # 40 + 192 + 256 = 488

    key = jax.random.PRNGKey(0)
    kx, ks, kp = jax.random.split(key, 3)
    x = jax.random.normal(kx, (B, x_width), jnp.float32)
    scaling_output = jax.random.normal(ks, (B, S, n_embd), jnp.float32)
    params = init_params(kp, table_dim, filter_dim, n_embd)

    cfg = dict(n_join_col=n_join_col, n_fanout=n_fanout, n_table=n_table,
               n_filter_col=n_filter_col, hist_dim=hist_dim,
               table_dim=table_dim, filter_dim=filter_dim)

    out = filter_embedding_forward(scaling_output, x, params,
                                   block_b=block_b, **cfg)
    out = jax.block_until_ready(out)

    ref = filter_embedding_reference(scaling_output, x, params, **cfg)
    # bf16 inputs / f32 accumulation vs. pure-f32 reference: tolerance covers
    # bf16 input-rounding error (~1e-2 absolute at these magnitudes).
    np.testing.assert_allclose(np.asarray(out), np.asarray(ref),
                               rtol=2e-2, atol=2e-2)

    print("KERNEL_OK")
</pallas_src>

<mosaic_0001>
module attributes {stable_mosaic.version = 11 : i64} {
  func.func @_filter_embedding_kernel(%arg0: i32, %arg1: memref<32x8x128xf32, #tpu.memory_space<vmem>>, %arg2: memref<32x8x24xbf16, #tpu.memory_space<vmem>>, %arg3: memref<32x16x16xbf16, #tpu.memory_space<vmem>>, %arg4: memref<24x128xbf16, #tpu.memory_space<vmem>>, %arg5: memref<1x128xf32, #tpu.memory_space<vmem>>, %arg6: memref<16x128xbf16, #tpu.memory_space<vmem>>, %arg7: memref<1x128xf32, #tpu.memory_space<vmem>>, %arg8: memref<32x32x128xf32, #tpu.memory_space<vmem>>) attributes {dimension_semantics = [#tpu.dimension_semantics<parallel>], iteration_bounds = array<i64: 2>, scalar_prefetch = 0 : i64, scratch_operands = 0 : i64, tpu.core_type = #tpu.core_type<tc>, window_params = [{transform_indices = @transform_0, window_bounds = array<i64: 32, 8, 128>}, {transform_indices = @transform_1, window_bounds = array<i64: 32, 8, 24>}, {transform_indices = @transform_2, window_bounds = array<i64: 32, 16, 16>}, {pipeline_mode = #tpu.pipeline_mode<synchronous>, transform_indices = @transform_3, window_bounds = array<i64: 24, 128>}, {pipeline_mode = #tpu.pipeline_mode<synchronous>, transform_indices = @transform_4, window_bounds = array<i64: 1, 128>}, {pipeline_mode = #tpu.pipeline_mode<synchronous>, transform_indices = @transform_5, window_bounds = array<i64: 16, 128>}, {pipeline_mode = #tpu.pipeline_mode<synchronous>, transform_indices = @transform_6, window_bounds = array<i64: 1, 128>}, {transform_indices = @transform_7, window_bounds = array<i64: 32, 32, 128>}]} {
    %c0 = arith.constant 0 : index
    %c0_0 = arith.constant 0 : index
    %c0_1 = arith.constant 0 : index
    %0 = vector.load %arg1[%c0, %c0_0, %c0_1] : memref<32x8x128xf32, #tpu.memory_space<vmem>>, vector<32x8x128xf32>
    %c0_2 = arith.constant 0 : index
    %c0_3 = arith.constant 0 : index
    %c0_4 = arith.constant 0 : index
    %1 = vector.load %arg8[%c0_2, %c0_3, %c0_4] : memref<32x32x128xf32, #tpu.memory_space<vmem>>, vector<32x8x128xf32>
    tpu.vector_store %arg8[%c0_2, %c0_3, %c0_4], %0 {strides = array<i32>} : memref<32x32x128xf32, #tpu.memory_space<vmem>>, vector<32x8x128xf32>,
    %c0_5 = arith.constant 0 : index
    %c0_6 = arith.constant 0 : index
    %c0_7 = arith.constant 0 : index
    %2 = vector.load %arg2[%c0_5, %c0_6, %c0_7] : memref<32x8x24xbf16, #tpu.memory_space<vmem>>, vector<32x8x24xbf16>
    %3 = vector.shape_cast %2 : vector<32x8x24xbf16> to vector<256x24xbf16>
    %c0_8 = arith.constant 0 : index
    %c0_9 = arith.constant 0 : index
    %4 = vector.load %arg4[%c0_8, %c0_9] : memref<24x128xbf16, #tpu.memory_space<vmem>>, vector<24x128xbf16>
    %cst = arith.constant dense<0.000000e+00> : vector<256x128xf32>
    %5 = tpu.matmul %3, %4, %cst {dimension_numbers = #tpu.dot_dimension_numbers<[1], [0], [0], [1], [0, 0, 1, 1], [], []>} : vector<256x24xbf16>, vector<24x128xbf16>, vector<256x128xf32> -> vector<256x128xf32>
    %c0_10 = arith.constant 0 : index
    %c0_11 = arith.constant 0 : index
    %6 = vector.load %arg5[%c0_10, %c0_11] : memref<1x128xf32, #tpu.memory_space<vmem>>, vector<1x128xf32>
    %7 = vector.broadcast %6 : vector<1x128xf32> to vector<256x128xf32>
    %8 = arith.addf %5, %7 : vector<256x128xf32>
    %9 = vector.shape_cast %8 : vector<256x128xf32> to vector<32x8x128xf32>
    %c0_12 = arith.constant 0 : index
    %c8 = arith.constant 8 : index
    %c0_13 = arith.constant 0 : index
    %10 = vector.load %arg8[%c0_12, %c8, %c0_13] : memref<32x32x128xf32, #tpu.memory_space<vmem>>, vector<32x8x128xf32>
    tpu.vector_store %arg8[%c0_12, %c8, %c0_13], %9 {strides = array<i32>} : memref<32x32x128xf32, #tpu.memory_space<vmem>>, vector<32x8x128xf32>,
    %c0_14 = arith.constant 0 : index
    %c0_15 = arith.constant 0 : index
    %c0_16 = arith.constant 0 : index
    %11 = vector.load %arg3[%c0_14, %c0_15, %c0_16] : memref<32x16x16xbf16, #tpu.memory_space<vmem>>, vector<32x16x16xbf16>
    %12 = vector.shape_cast %11 : vector<32x16x16xbf16> to vector<512x16xbf16>
    %c0_17 = arith.constant 0 : index
    %c0_18 = arith.constant 0 : index
    %13 = vector.load %arg6[%c0_17, %c0_18] : memref<16x128xbf16, #tpu.memory_space<vmem>>, vector<16x128xbf16>
    %cst_19 = arith.constant dense<0.000000e+00> : vector<512x128xf32>
    %14 = tpu.matmul %12, %13, %cst_19 {dimension_numbers = #tpu.dot_dimension_numbers<[1], [0], [0], [1], [0, 0, 1, 1], [], []>} : vector<512x16xbf16>, vector<16x128xbf16>, vector<512x128xf32> -> vector<512x128xf32>
    %c0_20 = arith.constant 0 : index
    %c0_21 = arith.constant 0 : index
    %15 = vector.load %arg7[%c0_20, %c0_21] : memref<1x128xf32, #tpu.memory_space<vmem>>, vector<1x128xf32>
    %16 = vector.broadcast %15 : vector<1x128xf32> to vector<512x128xf32>
    %17 = arith.addf %14, %16 : vector<512x128xf32>
    %18 = vector.shape_cast %17 : vector<512x128xf32> to vector<32x16x128xf32>
    %c0_22 = arith.constant 0 : index
    %c16 = arith.constant 16 : index
    %c0_23 = arith.constant 0 : index
    %19 = vector.load %arg8[%c0_22, %c16, %c0_23] : memref<32x32x128xf32, #tpu.memory_space<vmem>>, vector<32x16x128xf32>
    tpu.vector_store %arg8[%c0_22, %c16, %c0_23], %18 {strides = array<i32>} : memref<32x32x128xf32, #tpu.memory_space<vmem>>, vector<32x16x128xf32>,
    return
  }
  func.func @transform_0(%arg0: i32) -> (i32, i32, i32) {
    %c0_i32 = arith.constant 0 : i32
    %c0_i32_0 = arith.constant 0 : i32
    %c0_i32_1 = arith.constant 0 : i32
    return %arg0, %c0_i32, %c0_i32_0 : i32, i32, i32
  }
  func.func @transform_1(%arg0: i32) -> (i32, i32, i32) {
    %c0_i32 = arith.constant 0 : i32
    %c0_i32_0 = arith.constant 0 : i32
    %c0_i32_1 = arith.constant 0 : i32
    return %arg0, %c0_i32, %c0_i32_0 : i32, i32, i32
  }
  func.func @transform_2(%arg0: i32) -> (i32, i32, i32) {
    %c0_i32 = arith.constant 0 : i32
    %c0_i32_0 = arith.constant 0 : i32
    %c0_i32_1 = arith.constant 0 : i32
    return %arg0, %c0_i32, %c0_i32_0 : i32, i32, i32
  }
  func.func @transform_3(%arg0: i32) -> (i32, i32) {
    %c0_i32 = arith.constant 0 : i32
    %c0_i32_0 = arith.constant 0 : i32
    %c0_i32_1 = arith.constant 0 : i32
    return %c0_i32, %c0_i32_0 : i32, i32
  }
  func.func @transform_4(%arg0: i32) -> (i32, i32) {
    %c0_i32 = arith.constant 0 : i32
    %c0_i32_0 = arith.constant 0 : i32
    %c0_i32_1 = arith.constant 0 : i32
    return %c0_i32, %c0_i32_0 : i32, i32
  }
  func.func @transform_5(%arg0: i32) -> (i32, i32) {
    %c0_i32 = arith.constant 0 : i32
    %c0_i32_0 = arith.constant 0 : i32
    %c0_i32_1 = arith.constant 0 : i32
    return %c0_i32, %c0_i32_0 : i32, i32
  }
  func.func @transform_6(%arg0: i32) -> (i32, i32) {
    %c0_i32 = arith.constant 0 : i32
    %c0_i32_0 = arith.constant 0 : i32
    %c0_i32_1 = arith.constant 0 : i32
    return %c0_i32, %c0_i32_0 : i32, i32
  }
  func.func @transform_7(%arg0: i32) -> (i32, i32, i32) {
    %c0_i32 = arith.constant 0 : i32
    %c0_i32_0 = arith.constant 0 : i32
    %c0_i32_1 = arith.constant 0 : i32
    return %arg0, %c0_i32, %c0_i32_0 : i32, i32, i32
  }
}

</mosaic_0001>

<llo_original>
// kernel: tpu_custom_call.1
$region0: #{tpu_custom_call.1}
  #allocation0 [shape = 'u32[]', space=smem, size = 0x4, offset = 0x4, fixed_abs, tag = 'smem constant byte address 0x4 - core index']
  #allocation1 [shape = 'u32[144,128]{1,0:T(1,128)}', space=vmem, size = 0x12000, scoped, tag = 'internal scratch']
  %s0 = inlined_call_operand.vmem [shape: f32[64,8,128], index: 0, kind: input, shape index: {}]
  %s1 = inlined_call_operand.vmem [shape: bf16[64,8,24], index: 1, kind: input, shape index: {}]
  %s2 = inlined_call_operand.vmem [shape: bf16[64,16,16], index: 2, kind: input, shape index: {}]
  %s3 = inlined_call_operand.vmem [shape: bf16[24,128], index: 3, kind: input, shape index: {}]
  %s4 = inlined_call_operand.vmem [shape: f32[1,128], index: 4, kind: input, shape index: {}]
  %s5 = inlined_call_operand.vmem [shape: bf16[16,128], index: 5, kind: input, shape index: {}]
  %s6 = inlined_call_operand.vmem [shape: f32[1,128], index: 6, kind: input, shape index: {}]
  %s7 = inlined_call_operand.hbm [shape: f32[64,32,128], index: 7, kind: output, shape index: {}]
  %s8 = sld [smem:[#allocation0]]
  $region61: #{tpu_custom_call.1} parent=0
    _
  %s10 = ssub.s32 1, %s8
  %s11 = scalar_select 0, %s10, %s8
  $region1: #{tpu_custom_call.1} parent=0
    #allocation2 [shape = 'u8[1048576]{0}', space=vmem, size = 0x100000, scoped, tag = 'output window, operand 0']
    #allocation3 [shape = 's32[2]{0}', space=sflag, size = 0x8, scoped, tag = 'scoped memory for tpu_custom_call.1']
    %12 = vsyncpa [#allocation3], 0
    %s13 = scalar_lea.sflag [#allocation3], 1
    %14 = vsyncpa %s13, 0
    loop: start=0, step=1, limit=4
    $region2: #{tpu_custom_call.1} parent=1 // loop_pre_header
      _
    $region3: #{tpu_custom_call.1} parent=1 // loop_header
      %s16 = sphi 0, %s20
      %p17 = scmp.ge.s32.totalorder %s16, 4
      %s26 = sphi 0, %s28
      %s29 = sphi 0, %s26
      %s30 = sphi 0, %s29
      %s46 = sphi 0, %s30
      %s52 = sphi 0, %s54
      %s55 = sphi 0, %s52
      %s56 = sphi 0, %s55
      %s72 = sphi 0, %s56
      %s78 = sphi 0, %s80
      %s81 = sphi 0, %s78
      %s82 = sphi 0, %s81
      %s98 = sphi 0, %s82
      %s102 = sphi 0, %s102
      %s104 = sphi 0, %s102
      %s105 = sphi 0, %s104
      %s119 = sphi 0, %s105
      %s123 = sphi 0, %s123
      %s125 = sphi 0, %s123
      %s126 = sphi 0, %s125
      %s140 = sphi 0, %s126
      %s144 = sphi 0, %s144
      %s146 = sphi 0, %s144
      %s147 = sphi 0, %s146
      %s161 = sphi 0, %s147
      %s165 = sphi 0, %s165
      %s167 = sphi 0, %s165
      %s168 = sphi 0, %s167
      %s182 = sphi 0, %s168
      %s188 = sphi 0, %s190
      %s191 = sphi 0, %s188
      %s192 = sphi 0, %s191
      %s208 = sphi 0, %s192
    $region4: #{tpu_custom_call.1} parent=1 // loop_header_branch
      %19 = sbr.rel (%p17) target = $region8
    $region5: #{tpu_custom_call.1} parent=1 // loop_body
      %s21 = ssub.s32 %s16, 1
      %s22 = ssub.s32 %s16, 2
      %s23 = sadd.s32 %s16, 1
      %s24 = ssub.s32 %s16, %s23
      %p25 = scmp.eq.s32.totalorder %s24, 0
      %s27 = sadd.s32 %s26, 1
      %s28 = scalar_select %p25, %s26, %s27
      %p31 = pneg %p25
      %p32 = scmp.eq.s32.totalorder %s16, 1
      %p33 = por %p31, %p32
      %p34 = scmp.ne.s32.totalorder %s26, %s29
      %p35 = scmp.eq.s32.totalorder %s16, 0
      %p36 = por %p34, %p35
      %p37 = scmp.ne.s32.totalorder %s26, %s29
      %p38 = scmp.eq.s32.totalorder %s21, 1
      %p39 = por %p37, %p38
      %p40 = scmp.ne.s32.totalorder %s29, %s30
      %p41 = scmp.eq.s32.totalorder %s21, 0
      %p42 = por %p40, %p41
      %p43 = scmp.ne.s32.totalorder %s29, %s30
      %p44 = scmp.eq.s32.totalorder %s22, 1
      %p45 = por %p43, %p44
      %p47 = scmp.ne.s32.totalorder %s30, %s46
      %p48 = scmp.eq.s32.totalorder %s22, 0
      %p49 = por %p47, %p48
      %s50 = ssub.s32 %s16, %s23
      %p51 = scmp.eq.s32.totalorder %s50, 0
      %s53 = sadd.s32 %s52, 1
      %s54 = scalar_select %p51, %s52, %s53
      %p57 = pneg %p51
      %p58 = scmp.eq.s32.totalorder %s16, 1
      %p59 = por %p57, %p58
      %p60 = scmp.ne.s32.totalorder %s52, %s55
      %p61 = scmp.eq.s32.totalorder %s16, 0
      %p62 = por %p60, %p61
      %p63 = scmp.ne.s32.totalorder %s52, %s55
      %p64 = scmp.eq.s32.totalorder %s21, 1
      %p65 = por %p63, %p64
      %p66 = scmp.ne.s32.totalorder %s55, %s56
      %p67 = scmp.eq.s32.totalorder %s21, 0
      %p68 = por %p66, %p67
      %p69 = scmp.ne.s32.totalorder %s55, %s56
      %p70 = scmp.eq.s32.totalorder %s22, 1
      %p71 = por %p69, %p70
      %p73 = scmp.ne.s32.totalorder %s56, %s72
      %p74 = scmp.eq.s32.totalorder %s22, 0
      %p75 = por %p73, %p74
      %s76 = ssub.s32 %s16, %s23
      %p77 = scmp.eq.s32.totalorder %s76, 0
      %s79 = sadd.s32 %s78, 1
      %s80 = scalar_select %p77, %s78, %s79
      %p83 = pneg %p77
      %p84 = scmp.eq.s32.totalorder %s16, 1
      %p85 = por %p83, %p84
      %p86 = scmp.ne.s32.totalorder %s78, %s81
      %p87 = scmp.eq.s32.totalorder %s16, 0
      %p88 = por %p86, %p87
      %p89 = scmp.ne.s32.totalorder %s78, %s81
      %p90 = scmp.eq.s32.totalorder %s21, 1
      %p91 = por %p89, %p90
      %p92 = scmp.ne.s32.totalorder %s81, %s82
      %p93 = scmp.eq.s32.totalorder %s21, 0
      %p94 = por %p92, %p93
      %p95 = scmp.ne.s32.totalorder %s81, %s82
      %p96 = scmp.eq.s32.totalorder %s22, 1
      %p97 = por %p95, %p96
      %p99 = scmp.ne.s32.totalorder %s82, %s98
      %p100 = scmp.eq.s32.totalorder %s22, 0
      %p101 = por %p99, %p100
      %s103 = sadd.s32 %s102, 1
      %p106 = scmp.eq.s32.totalorder %s16, 1
      %p107 = scmp.ne.s32.totalorder %s102, %s104
      %p108 = scmp.eq.s32.totalorder %s16, 0
      %p109 = por %p107, %p108
      %p110 = scmp.ne.s32.totalorder %s102, %s104
      %p111 = scmp.eq.s32.totalorder %s21, 1
      %p112 = por %p110, %p111
      %p113 = scmp.ne.s32.totalorder %s104, %s105
      %p114 = scmp.eq.s32.totalorder %s21, 0
      %p115 = por %p113, %p114
      %p116 = scmp.ne.s32.totalorder %s104, %s105
      %p117 = scmp.eq.s32.totalorder %s22, 1
      %p118 = por %p116, %p117
      %p120 = scmp.ne.s32.totalorder %s105, %s119
      %p121 = scmp.eq.s32.totalorder %s22, 0
      %p122 = por %p120, %p121
      %s124 = sadd.s32 %s123, 1
      %p127 = scmp.eq.s32.totalorder %s16, 1
      %p128 = scmp.ne.s32.totalorder %s123, %s125
      %p129 = scmp.eq.s32.totalorder %s16, 0
      %p130 = por %p128, %p129
      %p131 = scmp.ne.s32.totalorder %s123, %s125
      %p132 = scmp.eq.s32.totalorder %s21, 1
      %p133 = por %p131, %p132
      %p134 = scmp.ne.s32.totalorder %s125, %s126
      %p135 = scmp.eq.s32.totalorder %s21, 0
      %p136 = por %p134, %p135
      %p137 = scmp.ne.s32.totalorder %s125, %s126
      %p138 = scmp.eq.s32.totalorder %s22, 1
      %p139 = por %p137, %p138
      %p141 = scmp.ne.s32.totalorder %s126, %s140
      %p142 = scmp.eq.s32.totalorder %s22, 0
      %p143 = por %p141, %p142
      %s145 = sadd.s32 %s144, 1
      %p148 = scmp.eq.s32.totalorder %s16, 1
      %p149 = scmp.ne.s32.totalorder %s144, %s146
      %p150 = scmp.eq.s32.totalorder %s16, 0
      %p151 = por %p149, %p150
      %p152 = scmp.ne.s32.totalorder %s144, %s146
      %p153 = scmp.eq.s32.totalorder %s21, 1
      %p154 = por %p152, %p153
      %p155 = scmp.ne.s32.totalorder %s146, %s147
      %p156 = scmp.eq.s32.totalorder %s21, 0
      %p157 = por %p155, %p156
      %p158 = scmp.ne.s32.totalorder %s146, %s147
      %p159 = scmp.eq.s32.totalorder %s22, 1
      %p160 = por %p158, %p159
      %p162 = scmp.ne.s32.totalorder %s147, %s161
      %p163 = scmp.eq.s32.totalorder %s22, 0
      %p164 = por %p162, %p163
      %s166 = sadd.s32 %s165, 1
      %p169 = scmp.eq.s32.totalorder %s16, 1
      %p170 = scmp.ne.s32.totalorder %s165, %s167
      %p171 = scmp.eq.s32.totalorder %s16, 0
      %p172 = por %p170, %p171
      %p173 = scmp.ne.s32.totalorder %s165, %s167
      %p174 = scmp.eq.s32.totalorder %s21, 1
      %p175 = por %p173, %p174
      %p176 = scmp.ne.s32.totalorder %s167, %s168
      %p177 = scmp.eq.s32.totalorder %s21, 0
      %p178 = por %p176, %p177
      %p179 = scmp.ne.s32.totalorder %s167, %s168
      %p180 = scmp.eq.s32.totalorder %s22, 1
      %p181 = por %p179, %p180
      %p183 = scmp.ne.s32.totalorder %s168, %s182
      %p184 = scmp.eq.s32.totalorder %s22, 0
      %p185 = por %p183, %p184
      %s186 = ssub.s32 %s16, %s23
      %p187 = scmp.eq.s32.totalorder %s186, 0
      %s189 = sadd.s32 %s188, 1
      %s190 = scalar_select %p187, %s188, %s189
      %p193 = pneg %p187
      %p194 = scmp.eq.s32.totalorder %s16, 1
      %p195 = por %p193, %p194
      %p196 = scmp.ne.s32.totalorder %s188, %s191
      %p197 = scmp.eq.s32.totalorder %s16, 0
      %p198 = por %p196, %p197
      %p199 = scmp.ne.s32.totalorder %s188, %s191
      %p200 = scmp.eq.s32.totalorder %s21, 1
      %p201 = por %p199, %p200
      %p202 = scmp.ne.s32.totalorder %s191, %s192
      %p203 = scmp.eq.s32.totalorder %s21, 0
      %p204 = por %p202, %p203
      %p205 = scmp.ne.s32.totalorder %s191, %s192
      %p206 = scmp.eq.s32.totalorder %s22, 1
      %p207 = por %p205, %p206
      %p209 = scmp.ne.s32.totalorder %s192, %s208
      %p210 = scmp.eq.s32.totalorder %s22, 0
      %p211 = por %p209, %p210
      %p212 = scmp.le.s32.totalorder 1, %s16
      %p213 = scmp.lt.s32.totalorder %s16, 3
      %p214 = pnand %p212, %p213
      %p215 = pneg %p214
      // Predicated region
      $region9: #{tpu_custom_call.1} parent=5 // pred_check
        _
      $region10: #{tpu_custom_call.1} parent=5 // pred_check_branch
        %217 = sbr.rel (%p214) target = $region12
      $region11: #{tpu_custom_call.1} parent=5 // pred_region
        %s218 = ssub.s32 %s16, 1
        // Predicated region
        $region13: #{tpu_custom_call.1} parent=11 // pred_check
          %p219 = pneg %p115
        $region14: #{tpu_custom_call.1} parent=11 // pred_check_branch
          %221 = sbr.rel (%p219) target = $region16
        $region15: #{tpu_custom_call.1} parent=11 // pred_region
          _
        $region16: #{tpu_custom_call.1} parent=11 // pred_fallthru
          _
        // Predicated region
        $region17: #{tpu_custom_call.1} parent=11 // pred_check
          %p222 = pneg %p136
        $region18: #{tpu_custom_call.1} parent=11 // pred_check_branch
          %224 = sbr.rel (%p222) target = $region20
        $region19: #{tpu_custom_call.1} parent=11 // pred_region
          _
        $region20: #{tpu_custom_call.1} parent=11 // pred_fallthru
          _
        // Predicated region
        $region21: #{tpu_custom_call.1} parent=11 // pred_check
          %p225 = pneg %p157
        $region22: #{tpu_custom_call.1} parent=11 // pred_check_branch
          %227 = sbr.rel (%p225) target = $region24
        $region23: #{tpu_custom_call.1} parent=11 // pred_region
          _
        $region24: #{tpu_custom_call.1} parent=11 // pred_fallthru
          _
        // Predicated region
        $region25: #{tpu_custom_call.1} parent=11 // pred_check
          %p228 = pneg %p178
        $region26: #{tpu_custom_call.1} parent=11 // pred_check_branch
          %230 = sbr.rel (%p228) target = $region28
        $region27: #{tpu_custom_call.1} parent=11 // pred_region
          _
        $region28: #{tpu_custom_call.1} parent=11 // pred_fallthru
          _
      $region12: #{tpu_custom_call.1} parent=5 // pred_fallthru
        _
      %p231 = scmp.lt.s32.totalorder %s16, 2
      // Predicated region
      $region29: #{tpu_custom_call.1} parent=5 // pred_check
        %p232 = pneg %p231
      $region30: #{tpu_custom_call.1} parent=5 // pred_check_branch
        %234 = sbr.rel (%p232) target = $region32
      $region31: #{tpu_custom_call.1} parent=5 // pred_region
        // Predicated region
        $region33: #{tpu_custom_call.1} parent=31 // pred_check
          %p235 = pneg %p36
        $region34: #{tpu_custom_call.1} parent=31 // pred_check_branch
          %237 = sbr.rel (%p235) target = $region36
        $region35: #{tpu_custom_call.1} parent=31 // pred_region
          %s238 = smul.u32 32, %s16
          %p239 = scmp.lt.s32.totalorder %s238, 63
          %s240 = scalar_select %p239, %s238, 63
          %s241 = smul.addr %s240, 8
          %s242 = scalar_lea.vmem %s0, %s241
          %s243 = smul.u32 32, %s16
        $region36: #{tpu_custom_call.1} parent=31 // pred_fallthru
          _
        // Predicated region
        $region37: #{tpu_custom_call.1} parent=31 // pred_check
          %p244 = pneg %p62
        $region38: #{tpu_custom_call.1} parent=31 // pred_check_branch
          %246 = sbr.rel (%p244) target = $region40
        $region39: #{tpu_custom_call.1} parent=31 // pred_region
          %s247 = smul.u32 32, %s16
          %p248 = scmp.lt.s32.totalorder %s247, 63
          %s249 = scalar_select %p248, %s247, 63
          %s250 = smul.addr %s249, 4
          %s251 = scalar_lea.vmem %s1, %s250
          %s252 = smul.u32 32, %s16
        $region40: #{tpu_custom_call.1} parent=31 // pred_fallthru
          _
        // Predicated region
        $region41: #{tpu_custom_call.1} parent=31 // pred_check
          %p253 = pneg %p88
        $region42: #{tpu_custom_call.1} parent=31 // pred_check_branch
          %255 = sbr.rel (%p253) target = $region44
        $region43: #{tpu_custom_call.1} parent=31 // pred_region
          %s256 = smul.u32 32, %s16
          %p257 = scmp.lt.s32.totalorder %s256, 63
          %s258 = scalar_select %p257, %s256, 63
          %s259 = smul.addr %s258, 2
          %s260 = smul.addr %s259, 4
          %s261 = scalar_lea.vmem %s2, %s260
          %s262 = smul.u32 32, %s16
        $region44: #{tpu_custom_call.1} parent=31 // pred_fallthru
          _
      $region32: #{tpu_custom_call.1} parent=5 // pred_fallthru
        _
      %p263 = scmp.le.s32.totalorder 1, %s16
      %p264 = scmp.lt.s32.totalorder %s16, 3
      %p265 = pnand %p263, %p264
      %p266 = pneg %p265
      // Predicated region
      $region45: #{tpu_custom_call.1} parent=5 // pred_check
        _
      $region46: #{tpu_custom_call.1} parent=5 // pred_check_branch
        %268 = sbr.rel (%p265) target = $region48
      $region47: #{tpu_custom_call.1} parent=5 // pred_region
        %s269 = ssub.s32 %s16, 1
        %s270 = smul.u32 32, %s21
        %p271 = scmp.lt.s32.totalorder %s270, 63
        %s272 = scalar_select %p271, %s270, 63
        %s273 = smul.addr %s272, 8
        %s274 = scalar_lea.vmem %s0, %s273
        %p275 = pneg %p42
        %p276 = pneg %p39
        %s277 = smul.u32 32, %s21
        %p278 = scmp.lt.s32.totalorder %s277, 63
        %s279 = scalar_select %p278, %s277, 63
        %s280 = smul.addr %s279, 4
        %s281 = scalar_lea.vmem %s1, %s280
        %p282 = pneg %p68
        %p283 = pneg %p65
        %s284 = smul.u32 32, %s21
        %p285 = scmp.lt.s32.totalorder %s284, 63
        %s286 = scalar_select %p285, %s284, 63
        %s287 = smul.addr %s286, 2
        %s288 = smul.addr %s287, 4
        %s289 = scalar_lea.vmem %s2, %s288
        %p290 = pneg %p94
        %p291 = pneg %p91
        %p292 = pneg %p115
        %p293 = pneg %p112
        %p294 = pneg %p136
        %p295 = pneg %p133
        %p296 = pneg %p157
        %p297 = pneg %p154
        %p298 = pneg %p178
        %p299 = pneg %p175
        %p300 = pneg %p204
        %p301 = pneg %p201
        %s302 = sand.u32 %s191, 1
        %s303 = scalar_lea.sflag [#allocation3], %s302
        %s304 = sand.u32 %s191, 1
        %s305 = smul.addr %s304, 1024
        %s306 = scalar_lea.vmem [#allocation2], %s305
        %s307 = smul.u32 32, %s21
        %p308 = scmp.lt.s32.totalorder %s307, 63
        %s309 = scalar_select %p308, %s307, 63
        %s310 = smul.addr %s309, 8
        %s311 = scalar_lea.vmem %s0, %s310
        %s312 = smul.u32 32, %s21
        %s313 = smul.u32 32, %s21
        %p314 = scmp.lt.s32.totalorder %s313, 63
        %s315 = scalar_select %p314, %s313, 63
        %s316 = smul.addr %s315, 4
        %s317 = scalar_lea.vmem %s1, %s316
        %s318 = smul.u32 32, %s21
        %s319 = smul.u32 32, %s21
        %p320 = scmp.lt.s32.totalorder %s319, 63
        %s321 = scalar_select %p320, %s319, 63
        %s322 = smul.addr %s321, 2
        %s323 = smul.addr %s322, 4
        %s324 = scalar_lea.vmem %s2, %s323
        %s325 = smul.u32 32, %s21
        %s326 = smul.u32 32, %s21
        %v328 = vld [vmem:[%s311] sm:$0xff]
        %v329 = vld [vmem:[%s311 + $0x8] sm:$0xff]
        %v330 = vld [vmem:[%s311 + $0x10] sm:$0xff]
        %v331 = vld [vmem:[%s311 + $0x18] sm:$0xff]
        %v332 = vld [vmem:[%s311 + $0x20] sm:$0xff]
        %v333 = vld [vmem:[%s311 + $0x28] sm:$0xff]
        %v334 = vld [vmem:[%s311 + $0x30] sm:$0xff]
        %v335 = vld [vmem:[%s311 + $0x38] sm:$0xff]
        %v336 = vld [vmem:[%s311 + $0x40] sm:$0xff]
        %v337 = vld [vmem:[%s311 + $0x48] sm:$0xff]
        %v338 = vld [vmem:[%s311 + $0x50] sm:$0xff]
        %v339 = vld [vmem:[%s311 + $0x58] sm:$0xff]
        %v340 = vld [vmem:[%s311 + $0x60] sm:$0xff]
        %v341 = vld [vmem:[%s311 + $0x68] sm:$0xff]
        %v342 = vld [vmem:[%s311 + $0x70] sm:$0xff]
        %v343 = vld [vmem:[%s311 + $0x78] sm:$0xff]
        %v344 = vld [vmem:[%s311 + $0x80] sm:$0xff]
        %v345 = vld [vmem:[%s311 + $0x88] sm:$0xff]
        %v346 = vld [vmem:[%s311 + $0x90] sm:$0xff]
        %v347 = vld [vmem:[%s311 + $0x98] sm:$0xff]
        %v348 = vld [vmem:[%s311 + $0xa0] sm:$0xff]
        %v349 = vld [vmem:[%s311 + $0xa8] sm:$0xff]
        %v350 = vld [vmem:[%s311 + $0xb0] sm:$0xff]
        %v351 = vld [vmem:[%s311 + $0xb8] sm:$0xff]
        %v352 = vld [vmem:[%s311 + $0xc0] sm:$0xff]
        %v353 = vld [vmem:[%s311 + $0xc8] sm:$0xff]
        %v354 = vld [vmem:[%s311 + $0xd0] sm:$0xff]
        %v355 = vld [vmem:[%s311 + $0xd8] sm:$0xff]
        %v356 = vld [vmem:[%s311 + $0xe0] sm:$0xff]
        %v357 = vld [vmem:[%s311 + $0xe8] sm:$0xff]
        %v358 = vld [vmem:[%s311 + $0xf0] sm:$0xff]
        %v359 = vld [vmem:[%s311 + $0xf8] sm:$0xff]
        %360 = vst [vmem:[%s306] sm:$0xff] %v328
        %361 = vst [vmem:[%s306 + $0x20] sm:$0xff] %v329
        %362 = vst [vmem:[%s306 + $0x40] sm:$0xff] %v330
        %363 = vst [vmem:[%s306 + $0x60] sm:$0xff] %v331
        %364 = vst [vmem:[%s306 + $0x80] sm:$0xff] %v332
        %365 = vst [vmem:[%s306 + $0xa0] sm:$0xff] %v333
        %366 = vst [vmem:[%s306 + $0xc0] sm:$0xff] %v334
        %367 = vst [vmem:[%s306 + $0xe0] sm:$0xff] %v335
        %368 = vst [vmem:[%s306 + $0x100] sm:$0xff] %v336
        %369 = vst [vmem:[%s306 + $0x120] sm:$0xff] %v337
        %370 = vst [vmem:[%s306 + $0x140] sm:$0xff] %v338
        %371 = vst [vmem:[%s306 + $0x160] sm:$0xff] %v339
        %372 = vst [vmem:[%s306 + $0x180] sm:$0xff] %v340
        %373 = vst [vmem:[%s306 + $0x1a0] sm:$0xff] %v341
        %374 = vst [vmem:[%s306 + $0x1c0] sm:$0xff] %v342
        %375 = vst [vmem:[%s306 + $0x1e0] sm:$0xff] %v343
        %376 = vst [vmem:[%s306 + $0x200] sm:$0xff] %v344
        %377 = vst [vmem:[%s306 + $0x220] sm:$0xff] %v345
        %378 = vst [vmem:[%s306 + $0x240] sm:$0xff] %v346
        %379 = vst [vmem:[%s306 + $0x260] sm:$0xff] %v347
        %380 = vst [vmem:[%s306 + $0x280] sm:$0xff] %v348
        %381 = vst [vmem:[%s306 + $0x2a0] sm:$0xff] %v349
        %382 = vst [vmem:[%s306 + $0x2c0] sm:$0xff] %v350
        %383 = vst [vmem:[%s306 + $0x2e0] sm:$0xff] %v351
        %384 = vst [vmem:[%s306 + $0x300] sm:$0xff] %v352
        %385 = vst [vmem:[%s306 + $0x320] sm:$0xff] %v353
        %386 = vst [vmem:[%s306 + $0x340] sm:$0xff] %v354
        %387 = vst [vmem:[%s306 + $0x360] sm:$0xff] %v355
        %388 = vst [vmem:[%s306 + $0x380] sm:$0xff] %v356
        %389 = vst [vmem:[%s306 + $0x3a0] sm:$0xff] %v357
        %390 = vst [vmem:[%s306 + $0x3c0] sm:$0xff] %v358
        %391 = vst [vmem:[%s306 + $0x3e0] sm:$0xff] %v359
        %v392 = vld [vmem:[%s317] sm:$0xf]
        %v393 = vld [vmem:[%s317 + $0x4] sm:$0xf]
        %v394 = vld [vmem:[%s317 + $0x8] sm:$0xf]
        %v395 = vld [vmem:[%s317 + $0xc] sm:$0xf]
        %v396 = vld [vmem:[%s317 + $0x10] sm:$0xf]
        %v397 = vld [vmem:[%s317 + $0x14] sm:$0xf]
        %v398 = vld [vmem:[%s317 + $0x18] sm:$0xf]
        %v399 = vld [vmem:[%s317 + $0x1c] sm:$0xf]
        %v400 = vld [vmem:[%s317 + $0x20] sm:$0xf]
        %v401 = vld [vmem:[%s317 + $0x24] sm:$0xf]
        %v402 = vld [vmem:[%s317 + $0x28] sm:$0xf]
        %v403 = vld [vmem:[%s317 + $0x2c] sm:$0xf]
        %v404 = vld [vmem:[%s317 + $0x30] sm:$0xf]
        %v405 = vld [vmem:[%s317 + $0x34] sm:$0xf]
        %v406 = vld [vmem:[%s317 + $0x38] sm:$0xf]
        %v407 = vld [vmem:[%s317 + $0x3c] sm:$0xf]
        %v408 = vld [vmem:[%s317 + $0x40] sm:$0xf]
        %v409 = vld [vmem:[%s317 + $0x44] sm:$0xf]
        %v410 = vld [vmem:[%s317 + $0x48] sm:$0xf]
        %v411 = vld [vmem:[%s317 + $0x4c] sm:$0xf]
        %v412 = vld [vmem:[%s317 + $0x50] sm:$0xf]
        %v413 = vld [vmem:[%s317 + $0x54] sm:$0xf]
        %v414 = vld [vmem:[%s317 + $0x58] sm:$0xf]
        %v415 = vld [vmem:[%s317 + $0x5c] sm:$0xf]
        %v416 = vld [vmem:[%s317 + $0x60] sm:$0xf]
        %v417 = vld [vmem:[%s317 + $0x64] sm:$0xf]
        %v418 = vld [vmem:[%s317 + $0x68] sm:$0xf]
        %v419 = vld [vmem:[%s317 + $0x6c] sm:$0xf]
        %v420 = vld [vmem:[%s317 + $0x70] sm:$0xf]
        %v421 = vld [vmem:[%s317 + $0x74] sm:$0xf]
        %v422 = vld [vmem:[%s317 + $0x78] sm:$0xf]
        %v423 = vld [vmem:[%s317 + $0x7c] sm:$0xf]
        %v424 = vld [vmem:[%s3] sm:$0xf]
        %v425 = vld [vmem:[%s3 + $0x4] sm:$0xf]
        %v426 = vld [vmem:[%s3 + $0x8] sm:$0xf]
        %v427 = vld [vmem:[%s4] sm:$0x1]
        %v429 = vlaneseq
        %v430 = vshrl.u32 %v429, 7
        %v431 = vsub.s32 0, %v430
        %v432 = vrot.slane %v427, %v431
        %v466 = vunpack.c.l.b16 %v392
        %v467 = vunpack.c.l.b16 %v393
        %v468 = vunpack.c.l.b16 %v394
        %v469 = vunpack.c.l.b16 %v395
        %v470 = vunpack.c.l.b16 %v396
        %v471 = vunpack.c.l.b16 %v397
        %v472 = vunpack.c.l.b16 %v398
        %v473 = vunpack.c.l.b16 %v399
        %v474 = vunpack.c.l.b16 %v400
        %v475 = vunpack.c.l.b16 %v401
        %v476 = vunpack.c.l.b16 %v402
        %v477 = vunpack.c.l.b16 %v403
        %v478 = vunpack.c.l.b16 %v404
        %v479 = vunpack.c.l.b16 %v405
        %v480 = vunpack.c.l.b16 %v406
        %v481 = vunpack.c.l.b16 %v407
        %v482 = vunpack.c.l.b16 %v408
        %v483 = vunpack.c.l.b16 %v409
        %v484 = vunpack.c.l.b16 %v410
        %v485 = vunpack.c.l.b16 %v411
        %v486 = vunpack.c.l.b16 %v412
        %v487 = vunpack.c.l.b16 %v413
        %v488 = vunpack.c.l.b16 %v414
        %v489 = vunpack.c.l.b16 %v415
        %v490 = vunpack.c.l.b16 %v416
        %v491 = vunpack.c.l.b16 %v417
        %v492 = vunpack.c.l.b16 %v418
        %v493 = vunpack.c.l.b16 %v419
        %v494 = vunpack.c.l.b16 %v420
        %v495 = vunpack.c.l.b16 %v421
        %v496 = vunpack.c.l.b16 %v422
        %v497 = vunpack.c.l.b16 %v423
        %v498 = vpack.c.b16 %v467, %v466
        %v499 = vpack.c.b16 %v469, %v468
        %v500 = vpack.c.b16 %v471, %v470
        %v501 = vpack.c.b16 %v473, %v472
        %v502 = vpack.c.b16 %v475, %v474
        %v503 = vpack.c.b16 %v477, %v476
        %v504 = vpack.c.b16 %v479, %v478
        %v505 = vpack.c.b16 %v481, %v480
        %v506 = vpack.c.b16 %v483, %v482
        %v507 = vpack.c.b16 %v485, %v484
        %v508 = vpack.c.b16 %v487, %v486
        %v509 = vpack.c.b16 %v489, %v488
        %v510 = vpack.c.b16 %v491, %v490
        %v511 = vpack.c.b16 %v493, %v492
        %v512 = vpack.c.b16 %v495, %v494
        %v513 = vpack.c.b16 %v497, %v496
        %v517 = vunpack.c.l.b16 %v424
        %v518 = vunpack.c.l.b16 %v425
        %v519 = vunpack.c.l.b16 %v426
        %v520 = vpack.c.b16 %v518, %v517
        %v521 = vpack.c.b16 %v519, %v519
        %vm523 = vcmask 195584
        %v525 = vsel %vm523, %v498, 0
        %v528 = vsel %vm523, %v499, 0
        %v531 = vsel %vm523, %v500, 0
        %v534 = vsel %vm523, %v501, 0
        %v537 = vsel %vm523, %v502, 0
        %v540 = vsel %vm523, %v503, 0
        %v543 = vsel %vm523, %v504, 0
        %v546 = vsel %vm523, %v505, 0
        %v549 = vsel %vm523, %v506, 0
        %v552 = vsel %vm523, %v507, 0
        %v555 = vsel %vm523, %v508, 0
        %v558 = vsel %vm523, %v509, 0
        %v561 = vsel %vm523, %v510, 0
        %v564 = vsel %vm523, %v511, 0
        %v567 = vsel %vm523, %v512, 0
        %v570 = vsel %vm523, %v513, 0
        %vm572 = vcmask 1043456
        %v574 = vsel %vm572, %v521, 0
        %576 = vmatprep.subr.bf16.mxu0 0
        %577 = vmatpush1.bf16.msra.mxu0 %v520
        %578 = vmatprep.subr.bf16.mxu0 0
        %579 = vmatpush1.bf16.msra.mxu0 %v574
        %580 = vmatprep.subr.bf16.mxu0 0
        %581 = vmatpush1.bf16.msra.mxu0 0
        %582 = vmatprep.subr.bf16.mxu0 0
        %583 = vmatpush1.bf16.msra.mxu0 0
        %584 = vmatprep.subr.bf16.mxu0 0
        %585 = vmatpush1.bf16.msra.mxu0 0
        %586 = vmatprep.subr.bf16.mxu0 0
        %587 = vmatpush1.bf16.msra.mxu0 0
        %588 = vmatprep.subr.bf16.mxu0 0
        %589 = vmatpush1.bf16.msra.mxu0 0
        %590 = vmatprep.subr.bf16.mxu0 0
        %591 = vmatpush1.bf16.msra.mxu0 0
        %592 = vmatprep.subr.bf16.mxu0 0
        %593 = vmatpush1.bf16.msra.mxu0 0
        %594 = vmatprep.subr.bf16.mxu0 0
        %595 = vmatpush1.bf16.msra.mxu0 0
        %596 = vmatprep.subr.bf16.mxu0 0
        %597 = vmatpush1.bf16.msra.mxu0 0
        %598 = vmatprep.subr.bf16.mxu0 0
        %599 = vmatpush1.bf16.msra.mxu0 0
        %600 = vmatprep.subr.bf16.mxu0 0
        %601 = vmatpush1.bf16.msra.mxu0 0
        %602 = vmatprep.subr.bf16.mxu0 0
        %603 = vmatpush1.bf16.msra.mxu0 0
        %604 = vmatprep.subr.bf16.mxu0 0
        %605 = vmatpush1.bf16.msra.mxu0 0
        %606 = vmatprep.subr.bf16.mxu0 0
        %607 = vmatpush1.bf16.msra.mxu0 0
        %608 = vmatprep.mubr.bf16.mxu0 0
        %609 = vmatmul.mubr.bf16.gmra.mrb[0].mxu0 %v525
        %v610 = vpop.f32.mrb[0].mxu0
        %v611 = vadd.f32 %v432, %v610
        %v612 = vpop.f32.mrb[0].mxu0
        %v613 = vpop.f32.mrb[0].mxu0
        %v614 = vadd.f32 %v432, %v613
        %v615 = vpop.f32.mrb[0].mxu0
        %616 = vmatprep.mubr.bf16.mxu0 0
        %617 = vmatmul.mubr.bf16.gmra.mrb[0].mxu0 %v528
        %v618 = vpop.f32.mrb[0].mxu0
        %v619 = vadd.f32 %v432, %v618
        %v620 = vpop.f32.mrb[0].mxu0
        %v621 = vpop.f32.mrb[0].mxu0
        %v622 = vadd.f32 %v432, %v621
        %v623 = vpop.f32.mrb[0].mxu0
        %624 = vmatprep.mubr.bf16.mxu0 0
        %625 = vmatmul.mubr.bf16.gmra.mrb[0].mxu0 %v531
        %v626 = vpop.f32.mrb[0].mxu0
        %v627 = vadd.f32 %v432, %v626
        %v628 = vpop.f32.mrb[0].mxu0
        %v629 = vpop.f32.mrb[0].mxu0
        %v630 = vadd.f32 %v432, %v629
        %v631 = vpop.f32.mrb[0].mxu0
        %632 = vmatprep.mubr.bf16.mxu0 0
        %633 = vmatmul.mubr.bf16.gmra.mrb[0].mxu0 %v534
        %v634 = vpop.f32.mrb[0].mxu0
        %v635 = vadd.f32 %v432, %v634
        %v636 = vpop.f32.mrb[0].mxu0
        %v637 = vpop.f32.mrb[0].mxu0
        %v638 = vadd.f32 %v432, %v637
        %v639 = vpop.f32.mrb[0].mxu0
        %640 = vmatprep.mubr.bf16.mxu0 0
        %641 = vmatmul.mubr.bf16.gmra.mrb[0].mxu0 %v537
        %v642 = vpop.f32.mrb[0].mxu0
        %v643 = vadd.f32 %v432, %v642
        %v644 = vpop.f32.mrb[0].mxu0
        %v645 = vpop.f32.mrb[0].mxu0
        %v646 = vadd.f32 %v432, %v645
        %v647 = vpop.f32.mrb[0].mxu0
        %648 = vmatprep.mubr.bf16.mxu0 0
        %649 = vmatmul.mubr.bf16.gmra.mrb[0].mxu0 %v540
        %v650 = vpop.f32.mrb[0].mxu0
        %v651 = vadd.f32 %v432, %v650
        %v652 = vpop.f32.mrb[0].mxu0
        %v653 = vpop.f32.mrb[0].mxu0
        %v654 = vadd.f32 %v432, %v653
        %v655 = vpop.f32.mrb[0].mxu0
        %656 = vmatprep.mubr.bf16.mxu0 0
        %657 = vmatmul.mubr.bf16.gmra.mrb[0].mxu0 %v543
        %v658 = vpop.f32.mrb[0].mxu0
        %v659 = vadd.f32 %v432, %v658
        %v660 = vpop.f32.mrb[0].mxu0
        %v661 = vpop.f32.mrb[0].mxu0
        %v662 = vadd.f32 %v432, %v661
        %v663 = vpop.f32.mrb[0].mxu0
        %664 = vmatprep.mubr.bf16.mxu0 0
        %665 = vmatmul.mubr.bf16.gmra.mrb[0].mxu0 %v546
        %v666 = vpop.f32.mrb[0].mxu0
        %v667 = vadd.f32 %v432, %v666
        %v668 = vpop.f32.mrb[0].mxu0
        %v669 = vpop.f32.mrb[0].mxu0
        %v670 = vadd.f32 %v432, %v669
        %v671 = vpop.f32.mrb[0].mxu0
        %672 = vmatprep.mubr.bf16.mxu0 0
        %673 = vmatmul.mubr.bf16.gmra.mrb[0].mxu0 %v549
        %v674 = vpop.f32.mrb[0].mxu0
        %v675 = vadd.f32 %v432, %v674
        %v676 = vpop.f32.mrb[0].mxu0
        %v677 = vpop.f32.mrb[0].mxu0
        %v678 = vadd.f32 %v432, %v677
        %v679 = vpop.f32.mrb[0].mxu0
        %680 = vmatprep.mubr.bf16.mxu0 0
        %681 = vmatmul.mubr.bf16.gmra.mrb[0].mxu0 %v552
        %v682 = vpop.f32.mrb[0].mxu0
        %v683 = vadd.f32 %v432, %v682
        %v684 = vpop.f32.mrb[0].mxu0
        %v685 = vpop.f32.mrb[0].mxu0
        %v686 = vadd.f32 %v432, %v685
        %v687 = vpop.f32.mrb[0].mxu0
        %688 = vmatprep.mubr.bf16.mxu0 0
        %689 = vmatmul.mubr.bf16.gmra.mrb[0].mxu0 %v555
        %v690 = vpop.f32.mrb[0].mxu0
        %v691 = vadd.f32 %v432, %v690
        %v692 = vpop.f32.mrb[0].mxu0
        %v693 = vpop.f32.mrb[0].mxu0
        %v694 = vadd.f32 %v432, %v693
        %v695 = vpop.f32.mrb[0].mxu0
        %696 = vmatprep.mubr.bf16.mxu0 0
        %697 = vmatmul.mubr.bf16.gmra.mrb[0].mxu0 %v558
        %v698 = vpop.f32.mrb[0].mxu0
        %v699 = vadd.f32 %v432, %v698
        %v700 = vpop.f32.mrb[0].mxu0
        %v701 = vpop.f32.mrb[0].mxu0
        %v702 = vadd.f32 %v432, %v701
        %v703 = vpop.f32.mrb[0].mxu0
        %704 = vmatprep.mubr.bf16.mxu0 0
        %705 = vmatmul.mubr.bf16.gmra.mrb[0].mxu0 %v561
        %v706 = vpop.f32.mrb[0].mxu0
        %v707 = vadd.f32 %v432, %v706
        %v708 = vpop.f32.mrb[0].mxu0
        %v709 = vpop.f32.mrb[0].mxu0
        %v710 = vadd.f32 %v432, %v709
        %v711 = vpop.f32.mrb[0].mxu0
        %712 = vmatprep.mubr.bf16.mxu0 0
        %713 = vmatmul.mubr.bf16.gmra.mrb[0].mxu0 %v564
        %v714 = vpop.f32.mrb[0].mxu0
        %v715 = vadd.f32 %v432, %v714
        %v716 = vpop.f32.mrb[0].mxu0
        %v717 = vpop.f32.mrb[0].mxu0
        %v718 = vadd.f32 %v432, %v717
        %v719 = vpop.f32.mrb[0].mxu0
        %720 = vmatprep.mubr.bf16.mxu0 0
        %721 = vmatmul.mubr.bf16.gmra.mrb[0].mxu0 %v567
        %v722 = vpop.f32.mrb[0].mxu0
        %v723 = vadd.f32 %v432, %v722
        %v724 = vpop.f32.mrb[0].mxu0
        %v725 = vpop.f32.mrb[0].mxu0
        %v726 = vadd.f32 %v432, %v725
        %v727 = vpop.f32.mrb[0].mxu0
        %728 = vmatprep.mubr.bf16.mxu0 0
        %729 = vmatmul.mubr.bf16.gmra.mrb[0].mxu0 %v570
        %v730 = vpop.f32.mrb[0].mxu0
        %v731 = vadd.f32 %v432, %v730
        %v732 = vpop.f32.mrb[0].mxu0
        %v733 = vpop.f32.mrb[0].mxu0
        %v734 = vadd.f32 %v432, %v733
        %v735 = vpop.f32.mrb[0].mxu0
        %736 = vdwg.mxu0
        %737 = vst [vmem:[%s306 + $0x8] sm:$0xff] %v611
        %738 = vst [vmem:[%s306 + $0x28] sm:$0xff] %v614
        %739 = vst [vmem:[%s306 + $0x48] sm:$0xff] %v619
        %740 = vst [vmem:[%s306 + $0x68] sm:$0xff] %v622
        %741 = vst [vmem:[%s306 + $0x88] sm:$0xff] %v627
        %742 = vst [vmem:[%s306 + $0xa8] sm:$0xff] %v630
        %743 = vst [vmem:[%s306 + $0xc8] sm:$0xff] %v635
        %744 = vst [vmem:[%s306 + $0xe8] sm:$0xff] %v638
        %745 = vst [vmem:[%s306 + $0x108] sm:$0xff] %v643
        %746 = vst [vmem:[%s306 + $0x128] sm:$0xff] %v646
        %747 = vst [vmem:[%s306 + $0x148] sm:$0xff] %v651
        %748 = vst [vmem:[%s306 + $0x168] sm:$0xff] %v654
        %749 = vst [vmem:[%s306 + $0x188] sm:$0xff] %v659
        %750 = vst [vmem:[%s306 + $0x1a8] sm:$0xff] %v662
        %751 = vst [vmem:[%s306 + $0x1c8] sm:$0xff] %v667
        %752 = vst [vmem:[%s306 + $0x1e8] sm:$0xff] %v670
        %753 = vst [vmem:[%s306 + $0x208] sm:$0xff] %v675
        %754 = vst [vmem:[%s306 + $0x228] sm:$0xff] %v678
        %755 = vst [vmem:[%s306 + $0x248] sm:$0xff] %v683
        %756 = vst [vmem:[%s306 + $0x268] sm:$0xff] %v686
        %757 = vst [vmem:[%s306 + $0x288] sm:$0xff] %v691
        %758 = vst [vmem:[%s306 + $0x2a8] sm:$0xff] %v694
        %759 = vst [vmem:[%s306 + $0x2c8] sm:$0xff] %v699
        %760 = vst [vmem:[%s306 + $0x2e8] sm:$0xff] %v702
        %761 = vst [vmem:[%s306 + $0x308] sm:$0xff] %v707
        %762 = vst [vmem:[%s306 + $0x328] sm:$0xff] %v710
        %763 = vst [vmem:[%s306 + $0x348] sm:$0xff] %v715
        %764 = vst [vmem:[%s306 + $0x368] sm:$0xff] %v718
        %765 = vst [vmem:[%s306 + $0x388] sm:$0xff] %v723
        %766 = vst [vmem:[%s306 + $0x3a8] sm:$0xff] %v726
        %767 = vst [vmem:[%s306 + $0x3c8] sm:$0xff] %v731
        %768 = vst [vmem:[%s306 + $0x3e8] sm:$0xff] %v734
        %v769 = vld [vmem:[%s324] sm:$0xf]
        %v770 = vld [vmem:[%s324 + $0x4] sm:$0xf]
        %v771 = vld [vmem:[%s324 + $0x8] sm:$0xf]
        %v772 = vld [vmem:[%s324 + $0xc] sm:$0xf]
        %v773 = vld [vmem:[%s324 + $0x10] sm:$0xf]
        %v774 = vld [vmem:[%s324 + $0x14] sm:$0xf]
        %v775 = vld [vmem:[%s324 + $0x18] sm:$0xf]
        %v776 = vld [vmem:[%s324 + $0x1c] sm:$0xf]
        %v777 = vld [vmem:[%s324 + $0x20] sm:$0xf]
        %v778 = vld [vmem:[%s324 + $0x24] sm:$0xf]
        %v779 = vld [vmem:[%s324 + $0x28] sm:$0xf]
        %v780 = vld [vmem:[%s324 + $0x2c] sm:$0xf]
        %v781 = vld [vmem:[%s324 + $0x30] sm:$0xf]
        %v782 = vld [vmem:[%s324 + $0x34] sm:$0xf]
        %v783 = vld [vmem:[%s324 + $0x38] sm:$0xf]
        %v784 = vld [vmem:[%s324 + $0x3c] sm:$0xf]
        %v785 = vld [vmem:[%s324 + $0x40] sm:$0xf]
        %v786 = vld [vmem:[%s324 + $0x44] sm:$0xf]
        %v787 = vld [vmem:[%s324 + $0x48] sm:$0xf]
        %v788 = vld [vmem:[%s324 + $0x4c] sm:$0xf]
        %v789 = vld [vmem:[%s324 + $0x50] sm:$0xf]
        %v790 = vld [vmem:[%s324 + $0x54] sm:$0xf]
        %v791 = vld [vmem:[%s324 + $0x58] sm:$0xf]
        %v792 = vld [vmem:[%s324 + $0x5c] sm:$0xf]
        %v793 = vld [vmem:[%s324 + $0x60] sm:$0xf]
        %v794 = vld [vmem:[%s324 + $0x64] sm:$0xf]
        %v795 = vld [vmem:[%s324 + $0x68] sm:$0xf]
        %v796 = vld [vmem:[%s324 + $0x6c] sm:$0xf]
        %v797 = vld [vmem:[%s324 + $0x70] sm:$0xf]
        %v798 = vld [vmem:[%s324 + $0x74] sm:$0xf]
        %v799 = vld [vmem:[%s324 + $0x78] sm:$0xf]
        %v800 = vld [vmem:[%s324 + $0x7c] sm:$0xf]
        %v801 = vld [vmem:[%s324 + $0x80] sm:$0xf]
        %v802 = vld [vmem:[%s324 + $0x84] sm:$0xf]
        %v803 = vld [vmem:[%s324 + $0x88] sm:$0xf]
        %v804 = vld [vmem:[%s324 + $0x8c] sm:$0xf]
        %v805 = vld [vmem:[%s324 + $0x90] sm:$0xf]
        %v806 = vld [vmem:[%s324 + $0x94] sm:$0xf]
        %v807 = vld [vmem:[%s324 + $0x98] sm:$0xf]
        %v808 = vld [vmem:[%s324 + $0x9c] sm:$0xf]
        %v809 = vld [vmem:[%s324 + $0xa0] sm:$0xf]
        %v810 = vld [vmem:[%s324 + $0xa4] sm:$0xf]
        %v811 = vld [vmem:[%s324 + $0xa8] sm:$0xf]
        %v812 = vld [vmem:[%s324 + $0xac] sm:$0xf]
        %v813 = vld [vmem:[%s324 + $0xb0] sm:$0xf]
        %v814 = vld [vmem:[%s324 + $0xb4] sm:$0xf]
        %v815 = vld [vmem:[%s324 + $0xb8] sm:$0xf]
        %v816 = vld [vmem:[%s324 + $0xbc] sm:$0xf]
        %v817 = vld [vmem:[%s324 + $0xc0] sm:$0xf]
        %v818 = vld [vmem:[%s324 + $0xc4] sm:$0xf]
        %v819 = vld [vmem:[%s324 + $0xc8] sm:$0xf]
        %v820 = vld [vmem:[%s324 + $0xcc] sm:$0xf]
        %v821 = vld [vmem:[%s324 + $0xd0] sm:$0xf]
        %v822 = vld [vmem:[%s324 + $0xd4] sm:$0xf]
        %v823 = vld [vmem:[%s324 + $0xd8] sm:$0xf]
        %v824 = vld [vmem:[%s324 + $0xdc] sm:$0xf]
        %v825 = vld [vmem:[%s324 + $0xe0] sm:$0xf]
        %v826 = vld [vmem:[%s324 + $0xe4] sm:$0xf]
        %v827 = vld [vmem:[%s324 + $0xe8] sm:$0xf]
        %v828 = vld [vmem:[%s324 + $0xec] sm:$0xf]
        %v829 = vld [vmem:[%s324 + $0xf0] sm:$0xf]
        %v830 = vld [vmem:[%s324 + $0xf4] sm:$0xf]
        %v831 = vld [vmem:[%s324 + $0xf8] sm:$0xf]
        %v832 = vld [vmem:[%s324 + $0xfc] sm:$0xf]
        %v833 = vld [vmem:[%s5] sm:$0xf]
        %v834 = vld [vmem:[%s5 + $0x4] sm:$0xf]
        %v835 = vld [vmem:[%s6] sm:$0x1]
        %v837 = vlaneseq
        %v838 = vshrl.u32 %v837, 7
        %v839 = vsub.s32 0, %v838
        %v840 = vrot.slane %v835, %v839
        %v906 = vunpack.c.l.b16 %v769
        %v907 = vunpack.c.l.b16 %v770
        %v908 = vunpack.c.l.b16 %v771
        %v909 = vunpack.c.l.b16 %v772
        %v910 = vunpack.c.l.b16 %v773
        %v911 = vunpack.c.l.b16 %v774
        %v912 = vunpack.c.l.b16 %v775
        %v913 = vunpack.c.l.b16 %v776
        %v914 = vunpack.c.l.b16 %v777
        %v915 = vunpack.c.l.b16 %v778
        %v916 = vunpack.c.l.b16 %v779
        %v917 = vunpack.c.l.b16 %v780
        %v918 = vunpack.c.l.b16 %v781
        %v919 = vunpack.c.l.b16 %v782
        %v920 = vunpack.c.l.b16 %v783
        %v921 = vunpack.c.l.b16 %v784
        %v922 = vunpack.c.l.b16 %v785
        %v923 = vunpack.c.l.b16 %v786
        %v924 = vunpack.c.l.b16 %v787
        %v925 = vunpack.c.l.b16 %v788
        %v926 = vunpack.c.l.b16 %v789
        %v927 = vunpack.c.l.b16 %v790
        %v928 = vunpack.c.l.b16 %v791
        %v929 = vunpack.c.l.b16 %v792
        %v930 = vunpack.c.l.b16 %v793
        %v931 = vunpack.c.l.b16 %v794
        %v932 = vunpack.c.l.b16 %v795
        %v933 = vunpack.c.l.b16 %v796
        %v934 = vunpack.c.l.b16 %v797
        %v935 = vunpack.c.l.b16 %v798
        %v936 = vunpack.c.l.b16 %v799
        %v937 = vunpack.c.l.b16 %v800
        %v938 = vunpack.c.l.b16 %v801
        %v939 = vunpack.c.l.b16 %v802
        %v940 = vunpack.c.l.b16 %v803
        %v941 = vunpack.c.l.b16 %v804
        %v942 = vunpack.c.l.b16 %v805
        %v943 = vunpack.c.l.b16 %v806
        %v944 = vunpack.c.l.b16 %v807
        %v945 = vunpack.c.l.b16 %v808
        %v946 = vunpack.c.l.b16 %v809
        %v947 = vunpack.c.l.b16 %v810
        %v948 = vunpack.c.l.b16 %v811
        %v949 = vunpack.c.l.b16 %v812
        %v950 = vunpack.c.l.b16 %v813
        %v951 = vunpack.c.l.b16 %v814
        %v952 = vunpack.c.l.b16 %v815
        %v953 = vunpack.c.l.b16 %v816
        %v954 = vunpack.c.l.b16 %v817
        %v955 = vunpack.c.l.b16 %v818
        %v956 = vunpack.c.l.b16 %v819
        %v957 = vunpack.c.l.b16 %v820
        %v958 = vunpack.c.l.b16 %v821
        %v959 = vunpack.c.l.b16 %v822
        %v960 = vunpack.c.l.b16 %v823
        %v961 = vunpack.c.l.b16 %v824
        %v962 = vunpack.c.l.b16 %v825
        %v963 = vunpack.c.l.b16 %v826
        %v964 = vunpack.c.l.b16 %v827
        %v965 = vunpack.c.l.b16 %v828
        %v966 = vunpack.c.l.b16 %v829
        %v967 = vunpack.c.l.b16 %v830
        %v968 = vunpack.c.l.b16 %v831
        %v969 = vunpack.c.l.b16 %v832
        %v970 = vpack.c.b16 %v907, %v906
        %v971 = vpack.c.b16 %v909, %v908
        %v972 = vpack.c.b16 %v911, %v910
        %v973 = vpack.c.b16 %v913, %v912
        %v974 = vpack.c.b16 %v915, %v914
        %v975 = vpack.c.b16 %v917, %v916
        %v976 = vpack.c.b16 %v919, %v918
        %v977 = vpack.c.b16 %v921, %v920
        %v978 = vpack.c.b16 %v923, %v922
        %v979 = vpack.c.b16 %v925, %v924
        %v980 = vpack.c.b16 %v927, %v926
        %v981 = vpack.c.b16 %v929, %v928
        %v982 = vpack.c.b16 %v931, %v930
        %v983 = vpack.c.b16 %v933, %v932
        %v984 = vpack.c.b16 %v935, %v934
        %v985 = vpack.c.b16 %v937, %v936
        %v986 = vpack.c.b16 %v939, %v938
        %v987 = vpack.c.b16 %v941, %v940
        %v988 = vpack.c.b16 %v943, %v942
        %v989 = vpack.c.b16 %v945, %v944
        %v990 = vpack.c.b16 %v947, %v946
        %v991 = vpack.c.b16 %v949, %v948
        %v992 = vpack.c.b16 %v951, %v950
        %v993 = vpack.c.b16 %v953, %v952
        %v994 = vpack.c.b16 %v955, %v954
        %v995 = vpack.c.b16 %v957, %v956
        %v996 = vpack.c.b16 %v959, %v958
        %v997 = vpack.c.b16 %v961, %v960
        %v998 = vpack.c.b16 %v963, %v962
        %v999 = vpack.c.b16 %v965, %v964
        %v1000 = vpack.c.b16 %v967, %v966
        %v1001 = vpack.c.b16 %v969, %v968
        %v1004 = vunpack.c.l.b16 %v833
        %v1005 = vunpack.c.l.b16 %v834
        %v1006 = vpack.c.b16 %v1005, %v1004
        %vm1008 = vcmask 130048
        %v1010 = vsel %vm1008, %v970, 0
        %v1013 = vsel %vm1008, %v971, 0
        %v1016 = vsel %vm1008, %v972, 0
        %v1019 = vsel %vm1008, %v973, 0
        %v1022 = vsel %vm1008, %v974, 0
        %v1025 = vsel %vm1008, %v975, 0
        %v1028 = vsel %vm1008, %v976, 0
        %v1031 = vsel %vm1008, %v977, 0
        %v1034 = vsel %vm1008, %v978, 0
        %v1037 = vsel %vm1008, %v979, 0
        %v1040 = vsel %vm1008, %v980, 0
        %v1043 = vsel %vm1008, %v981, 0
        %v1046 = vsel %vm1008, %v982, 0
        %v1049 = vsel %vm1008, %v983, 0
        %v1052 = vsel %vm1008, %v984, 0
        %v1055 = vsel %vm1008, %v985, 0
        %v1058 = vsel %vm1008, %v986, 0
        %v1061 = vsel %vm1008, %v987, 0
        %v1064 = vsel %vm1008, %v988, 0
        %v1067 = vsel %vm1008, %v989, 0
        %v1070 = vsel %vm1008, %v990, 0
        %v1073 = vsel %vm1008, %v991, 0
        %v1076 = vsel %vm1008, %v992, 0
        %v1079 = vsel %vm1008, %v993, 0
        %v1082 = vsel %vm1008, %v994, 0
        %v1085 = vsel %vm1008, %v995, 0
        %v1088 = vsel %vm1008, %v996, 0
        %v1091 = vsel %vm1008, %v997, 0
        %v1094 = vsel %vm1008, %v998, 0
        %v1097 = vsel %vm1008, %v999, 0
        %v1100 = vsel %vm1008, %v1000, 0
        %v1103 = vsel %vm1008, %v1001, 0
        %1105 = vmatprep.subr.bf16.mxu0 0
        %1106 = vmatpush1.bf16.msra.mxu0 %v1006
        %1107 = vmatprep.subr.bf16.mxu0 0
        %1108 = vmatpush1.bf16.msra.mxu0 0
        %1109 = vmatprep.subr.bf16.mxu0 0
        %1110 = vmatpush1.bf16.msra.mxu0 0
        %1111 = vmatprep.subr.bf16.mxu0 0
        %1112 = vmatpush1.bf16.msra.mxu0 0
        %1113 = vmatprep.subr.bf16.mxu0 0
        %1114 = vmatpush1.bf16.msra.mxu0 0
        %1115 = vmatprep.subr.bf16.mxu0 0
        %1116 = vmatpush1.bf16.msra.mxu0 0
        %1117 = vmatprep.subr.bf16.mxu0 0
        %1118 = vmatpush1.bf16.msra.mxu0 0
        %1119 = vmatprep.subr.bf16.mxu0 0
        %1120 = vmatpush1.bf16.msra.mxu0 0
        %1121 = vmatprep.subr.bf16.mxu0 0
        %1122 = vmatpush1.bf16.msra.mxu0 0
        %1123 = vmatprep.subr.bf16.mxu0 0
        %1124 = vmatpush1.bf16.msra.mxu0 0
        %1125 = vmatprep.subr.bf16.mxu0 0
        %1126 = vmatpush1.bf16.msra.mxu0 0
        %1127 = vmatprep.subr.bf16.mxu0 0
        %1128 = vmatpush1.bf16.msra.mxu0 0
        %1129 = vmatprep.subr.bf16.mxu0 0
        %1130 = vmatpush1.bf16.msra.mxu0 0
        %1131 = vmatprep.subr.bf16.mxu0 0
        %1132 = vmatpush1.bf16.msra.mxu0 0
        %1133 = vmatprep.subr.bf16.mxu0 0
        %1134 = vmatpush1.bf16.msra.mxu0 0
        %1135 = vmatprep.subr.bf16.mxu0 0
        %1136 = vmatpush1.bf16.msra.mxu0 0
        %1137 = vmatprep.mubr.bf16.mxu0 0
        %1138 = vmatmul.mubr.bf16.gmra.mrb[0].mxu0 %v1010
        %v1139 = vpop.f32.mrb[0].mxu0
        %v1140 = vadd.f32 %v840, %v1139
        %v1141 = vpop.f32.mrb[0].mxu0
        %v1142 = vpop.f32.mrb[0].mxu0
        %v1143 = vadd.f32 %v840, %v1142
        %v1144 = vpop.f32.mrb[0].mxu0
        %1145 = vmatprep.mubr.bf16.mxu0 0
        %1146 = vmatmul.mubr.bf16.gmra.mrb[0].mxu0 %v1013
        %v1147 = vpop.f32.mrb[0].mxu0
        %v1148 = vadd.f32 %v840, %v1147
        %v1149 = vpop.f32.mrb[0].mxu0
        %v1150 = vpop.f32.mrb[0].mxu0
        %v1151 = vadd.f32 %v840, %v1150
        %v1152 = vpop.f32.mrb[0].mxu0
        %1153 = vmatprep.mubr.bf16.mxu0 0
        %1154 = vmatmul.mubr.bf16.gmra.mrb[0].mxu0 %v1016
        %v1155 = vpop.f32.mrb[0].mxu0
        %v1156 = vadd.f32 %v840, %v1155
        %v1157 = vpop.f32.mrb[0].mxu0
        %v1158 = vpop.f32.mrb[0].mxu0
        %v1159 = vadd.f32 %v840, %v1158
        %v1160 = vpop.f32.mrb[0].mxu0
        %1161 = vmatprep.mubr.bf16.mxu0 0
        %1162 = vmatmul.mubr.bf16.gmra.mrb[0].mxu0 %v1019
        %v1163 = vpop.f32.mrb[0].mxu0
        %v1164 = vadd.f32 %v840, %v1163
        %v1165 = vpop.f32.mrb[0].mxu0
        %v1166 = vpop.f32.mrb[0].mxu0
        %v1167 = vadd.f32 %v840, %v1166
        %v1168 = vpop.f32.mrb[0].mxu0
        %1169 = vmatprep.mubr.bf16.mxu0 0
        %1170 = vmatmul.mubr.bf16.gmra.mrb[0].mxu0 %v1022
        %v1171 = vpop.f32.mrb[0].mxu0
        %v1172 = vadd.f32 %v840, %v1171
        %v1173 = vpop.f32.mrb[0].mxu0
        %v1174 = vpop.f32.mrb[0].mxu0
        %v1175 = vadd.f32 %v840, %v1174
        %v1176 = vpop.f32.mrb[0].mxu0
        %1177 = vmatprep.mubr.bf16.mxu0 0
        %1178 = vmatmul.mubr.bf16.gmra.mrb[0].mxu0 %v1025
        %v1179 = vpop.f32.mrb[0].mxu0
        %v1180 = vadd.f32 %v840, %v1179
        %v1181 = vpop.f32.mrb[0].mxu0
        %v1182 = vpop.f32.mrb[0].mxu0
        %v1183 = vadd.f32 %v840, %v1182
        %v1184 = vpop.f32.mrb[0].mxu0
        %1185 = vmatprep.mubr.bf16.mxu0 0
        %1186 = vmatmul.mubr.bf16.gmra.mrb[0].mxu0 %v1028
        %v1187 = vpop.f32.mrb[0].mxu0
        %v1188 = vadd.f32 %v840, %v1187
        %v1189 = vpop.f32.mrb[0].mxu0
        %v1190 = vpop.f32.mrb[0].mxu0
        %v1191 = vadd.f32 %v840, %v1190
        %v1192 = vpop.f32.mrb[0].mxu0
        %1193 = vmatprep.mubr.bf16.mxu0 0
        %1194 = vmatmul.mubr.bf16.gmra.mrb[0].mxu0 %v1031
        %v1195 = vpop.f32.mrb[0].mxu0
        %v1196 = vadd.f32 %v840, %v1195
        %v1197 = vpop.f32.mrb[0].mxu0
        %v1198 = vpop.f32.mrb[0].mxu0
        %v1199 = vadd.f32 %v840, %v1198
        %v1200 = vpop.f32.mrb[0].mxu0
        %1201 = vmatprep.mubr.bf16.mxu0 0
        %1202 = vmatmul.mubr.bf16.gmra.mrb[0].mxu0 %v1034
        %v1203 = vpop.f32.mrb[0].mxu0
        %v1204 = vadd.f32 %v840, %v1203
        %v1205 = vpop.f32.mrb[0].mxu0
        %v1206 = vpop.f32.mrb[0].mxu0
        %v1207 = vadd.f32 %v840, %v1206
        %v1208 = vpop.f32.mrb[0].mxu0
        %1209 = vmatprep.mubr.bf16.mxu0 0
        %1210 = vmatmul.mubr.bf16.gmra.mrb[0].mxu0 %v1037
        %v1211 = vpop.f32.mrb[0].mxu0
        %v1212 = vadd.f32 %v840, %v1211
        %v1213 = vpop.f32.mrb[0].mxu0
        %v1214 = vpop.f32.mrb[0].mxu0
        %v1215 = vadd.f32 %v840, %v1214
        %v1216 = vpop.f32.mrb[0].mxu0
        %1217 = vmatprep.mubr.bf16.mxu0 0
        %1218 = vmatmul.mubr.bf16.gmra.mrb[0].mxu0 %v1040
        %v1219 = vpop.f32.mrb[0].mxu0
        %v1220 = vadd.f32 %v840, %v1219
        %v1221 = vpop.f32.mrb[0].mxu0
        %v1222 = vpop.f32.mrb[0].mxu0
        %v1223 = vadd.f32 %v840, %v1222
        %v1224 = vpop.f32.mrb[0].mxu0
        %1225 = vmatprep.mubr.bf16.mxu0 0
        %1226 = vmatmul.mubr.bf16.gmra.mrb[0].mxu0 %v1043
        %v1227 = vpop.f32.mrb[0].mxu0
        %v1228 = vadd.f32 %v840, %v1227
        %v1229 = vpop.f32.mrb[0].mxu0
        %v1230 = vpop.f32.mrb[0].mxu0
        %v1231 = vadd.f32 %v840, %v1230
        %v1232 = vpop.f32.mrb[0].mxu0
        %1233 = vmatprep.mubr.bf16.mxu0 0
        %1234 = vmatmul.mubr.bf16.gmra.mrb[0].mxu0 %v1046
        %v1235 = vpop.f32.mrb[0].mxu0
        %v1236 = vadd.f32 %v840, %v1235
        %v1237 = vpop.f32.mrb[0].mxu0
        %v1238 = vpop.f32.mrb[0].mxu0
        %v1239 = vadd.f32 %v840, %v1238
        %v1240 = vpop.f32.mrb[0].mxu0
        %1241 = vmatprep.mubr.bf16.mxu0 0
        %1242 = vmatmul.mubr.bf16.gmra.mrb[0].mxu0 %v1049
        %v1243 = vpop.f32.mrb[0].mxu0
        %v1244 = vadd.f32 %v840, %v1243
        %v1245 = vpop.f32.mrb[0].mxu0
        %v1246 = vpop.f32.mrb[0].mxu0
        %v1247 = vadd.f32 %v840, %v1246
        %v1248 = vpop.f32.mrb[0].mxu0
        %1249 = vmatprep.mubr.bf16.mxu0 0
        %1250 = vmatmul.mubr.bf16.gmra.mrb[0].mxu0 %v1052
        %v1251 = vpop.f32.mrb[0].mxu0
        %v1252 = vadd.f32 %v840, %v1251
        %v1253 = vpop.f32.mrb[0].mxu0
        %v1254 = vpop.f32.mrb[0].mxu0
        %v1255 = vadd.f32 %v840, %v1254
        %v1256 = vpop.f32.mrb[0].mxu0
        %1257 = vmatprep.mubr.bf16.mxu0 0
        %1258 = vmatmul.mubr.bf16.gmra.mrb[0].mxu0 %v1055
        %v1259 = vpop.f32.mrb[0].mxu0
        %v1260 = vadd.f32 %v840, %v1259
        %v1261 = vpop.f32.mrb[0].mxu0
        %v1262 = vpop.f32.mrb[0].mxu0
        %v1263 = vadd.f32 %v840, %v1262
        %v1264 = vpop.f32.mrb[0].mxu0
        %1265 = vmatprep.mubr.bf16.mxu0 0
        %1266 = vmatmul.mubr.bf16.gmra.mrb[0].mxu0 %v1058
        %v1267 = vpop.f32.mrb[0].mxu0
        %v1268 = vadd.f32 %v840, %v1267
        %v1269 = vpop.f32.mrb[0].mxu0
        %v1270 = vpop.f32.mrb[0].mxu0
        %v1271 = vadd.f32 %v840, %v1270
        %v1272 = vpop.f32.mrb[0].mxu0
        %1273 = vmatprep.mubr.bf16.mxu0 0
        %1274 = vmatmul.mubr.bf16.gmra.mrb[0].mxu0 %v1061
        %v1275 = vpop.f32.mrb[0].mxu0
        %v1276 = vadd.f32 %v840, %v1275
        %v1277 = vpop.f32.mrb[0].mxu0
        %v1278 = vpop.f32.mrb[0].mxu0
        %v1279 = vadd.f32 %v840, %v1278
        %v1280 = vpop.f32.mrb[0].mxu0
        %1281 = vmatprep.mubr.bf16.mxu0 0
        %1282 = vmatmul.mubr.bf16.gmra.mrb[0].mxu0 %v1064
        %v1283 = vpop.f32.mrb[0].mxu0
        %v1284 = vadd.f32 %v840, %v1283
        %v1285 = vpop.f32.mrb[0].mxu0
        %v1286 = vpop.f32.mrb[0].mxu0
        %v1287 = vadd.f32 %v840, %v1286
        %v1288 = vpop.f32.mrb[0].mxu0
        %1289 = vmatprep.mubr.bf16.mxu0 0
        %1290 = vmatmul.mubr.bf16.gmra.mrb[0].mxu0 %v1067
        %v1291 = vpop.f32.mrb[0].mxu0
        %v1292 = vadd.f32 %v840, %v1291
        %v1293 = vpop.f32.mrb[0].mxu0
        %v1294 = vpop.f32.mrb[0].mxu0
        %v1295 = vadd.f32 %v840, %v1294
        %v1296 = vpop.f32.mrb[0].mxu0
        %1297 = vmatprep.mubr.bf16.mxu0 0
        %1298 = vmatmul.mubr.bf16.gmra.mrb[0].mxu0 %v1070
        %v1299 = vpop.f32.mrb[0].mxu0
        %v1300 = vadd.f32 %v840, %v1299
        %v1301 = vpop.f32.mrb[0].mxu0
        %v1302 = vpop.f32.mrb[0].mxu0
        %v1303 = vadd.f32 %v840, %v1302
        %v1304 = vpop.f32.mrb[0].mxu0
        %1305 = vmatprep.mubr.bf16.mxu0 0
        %1306 = vmatmul.mubr.bf16.gmra.mrb[0].mxu0 %v1073
        %v1307 = vpop.f32.mrb[0].mxu0
        %v1308 = vadd.f32 %v840, %v1307
        %v1309 = vpop.f32.mrb[0].mxu0
        %v1310 = vpop.f32.mrb[0].mxu0
        %v1311 = vadd.f32 %v840, %v1310
        %v1312 = vpop.f32.mrb[0].mxu0
        %1313 = vmatprep.mubr.bf16.mxu0 0
        %1314 = vmatmul.mubr.bf16.gmra.mrb[0].mxu0 %v1076
        %v1315 = vpop.f32.mrb[0].mxu0
        %v1316 = vadd.f32 %v840, %v1315
        %v1317 = vpop.f32.mrb[0].mxu0
        %v1318 = vpop.f32.mrb[0].mxu0
        %v1319 = vadd.f32 %v840, %v1318
        %v1320 = vpop.f32.mrb[0].mxu0
        %1321 = vmatprep.mubr.bf16.mxu0 0
        %1322 = vmatmul.mubr.bf16.gmra.mrb[0].mxu0 %v1079
        %v1323 = vpop.f32.mrb[0].mxu0
        %v1324 = vadd.f32 %v840, %v1323
        %v1325 = vpop.f32.mrb[0].mxu0
        %v1326 = vpop.f32.mrb[0].mxu0
        %v1327 = vadd.f32 %v840, %v1326
        %v1328 = vpop.f32.mrb[0].mxu0
        %1329 = vmatprep.mubr.bf16.mxu0 0
        %1330 = vmatmul.mubr.bf16.gmra.mrb[0].mxu0 %v1082
        %v1331 = vpop.f32.mrb[0].mxu0
        %v1332 = vadd.f32 %v840, %v1331
        %v1333 = vpop.f32.mrb[0].mxu0
        %v1334 = vpop.f32.mrb[0].mxu0
        %v1335 = vadd.f32 %v840, %v1334
        %v1336 = vpop.f32.mrb[0].mxu0
        %1337 = vmatprep.mubr.bf16.mxu0 0
        %1338 = vmatmul.mubr.bf16.gmra.mrb[0].mxu0 %v1085
        %v1339 = vpop.f32.mrb[0].mxu0
        %v1340 = vadd.f32 %v840, %v1339
        %v1341 = vpop.f32.mrb[0].mxu0
        %v1342 = vpop.f32.mrb[0].mxu0
        %v1343 = vadd.f32 %v840, %v1342
        %v1344 = vpop.f32.mrb[0].mxu0
        %1345 = vmatprep.mubr.bf16.mxu0 0
        %1346 = vmatmul.mubr.bf16.gmra.mrb[0].mxu0 %v1088
        %v1347 = vpop.f32.mrb[0].mxu0
        %v1348 = vadd.f32 %v840, %v1347
        %v1349 = vpop.f32.mrb[0].mxu0
        %v1350 = vpop.f32.mrb[0].mxu0
        %v1351 = vadd.f32 %v840, %v1350
        %v1352 = vpop.f32.mrb[0].mxu0
        %1353 = vmatprep.mubr.bf16.mxu0 0
        %1354 = vmatmul.mubr.bf16.gmra.mrb[0].mxu0 %v1091
        %v1355 = vpop.f32.mrb[0].mxu0
        %v1356 = vadd.f32 %v840, %v1355
        %v1357 = vpop.f32.mrb[0].mxu0
        %v1358 = vpop.f32.mrb[0].mxu0
        %v1359 = vadd.f32 %v840, %v1358
        %v1360 = vpop.f32.mrb[0].mxu0
        %1361 = vmatprep.mubr.bf16.mxu0 0
        %1362 = vmatmul.mubr.bf16.gmra.mrb[0].mxu0 %v1094
        %v1363 = vpop.f32.mrb[0].mxu0
        %v1364 = vadd.f32 %v840, %v1363
        %v1365 = vpop.f32.mrb[0].mxu0
        %v1366 = vpop.f32.mrb[0].mxu0
        %v1367 = vadd.f32 %v840, %v1366
        %v1368 = vpop.f32.mrb[0].mxu0
        %1369 = vmatprep.mubr.bf16.mxu0 0
        %1370 = vmatmul.mubr.bf16.gmra.mrb[0].mxu0 %v1097
        %v1371 = vpop.f32.mrb[0].mxu0
        %v1372 = vadd.f32 %v840, %v1371
        %v1373 = vpop.f32.mrb[0].mxu0
        %v1374 = vpop.f32.mrb[0].mxu0
        %v1375 = vadd.f32 %v840, %v1374
        %v1376 = vpop.f32.mrb[0].mxu0
        %1377 = vmatprep.mubr.bf16.mxu0 0
        %1378 = vmatmul.mubr.bf16.gmra.mrb[0].mxu0 %v1100
        %v1379 = vpop.f32.mrb[0].mxu0
        %v1380 = vadd.f32 %v840, %v1379
        %v1381 = vpop.f32.mrb[0].mxu0
        %v1382 = vpop.f32.mrb[0].mxu0
        %v1383 = vadd.f32 %v840, %v1382
        %v1384 = vpop.f32.mrb[0].mxu0
        %1385 = vmatprep.mubr.bf16.mxu0 0
        %1386 = vmatmul.mubr.bf16.gmra.mrb[0].mxu0 %v1103
        %v1387 = vpop.f32.mrb[0].mxu0
        %v1388 = vadd.f32 %v840, %v1387
        %v1389 = vpop.f32.mrb[0].mxu0
        %v1390 = vpop.f32.mrb[0].mxu0
        %v1391 = vadd.f32 %v840, %v1390
        %v1392 = vpop.f32.mrb[0].mxu0
        %1393 = vdwg.mxu0
        %1394 = vst [vmem:[%s306 + $0x10] sm:$0xff] %v1140
        %1395 = vst [vmem:[%s306 + $0x18] sm:$0xff] %v1143
        %1396 = vst [vmem:[%s306 + $0x30] sm:$0xff] %v1148
        %1397 = vst [vmem:[%s306 + $0x38] sm:$0xff] %v1151
        %1398 = vst [vmem:[%s306 + $0x50] sm:$0xff] %v1156
        %1399 = vst [vmem:[%s306 + $0x58] sm:$0xff] %v1159
        %1400 = vst [vmem:[%s306 + $0x70] sm:$0xff] %v1164
        %1401 = vst [vmem:[%s306 + $0x78] sm:$0xff] %v1167
        %1402 = vst [vmem:[%s306 + $0x90] sm:$0xff] %v1172
        %1403 = vst [vmem:[%s306 + $0x98] sm:$0xff] %v1175
        %1404 = vst [vmem:[%s306 + $0xb0] sm:$0xff] %v1180
        %1405 = vst [vmem:[%s306 + $0xb8] sm:$0xff] %v1183
        %1406 = vst [vmem:[%s306 + $0xd0] sm:$0xff] %v1188
        %1407 = vst [vmem:[%s306 + $0xd8] sm:$0xff] %v1191
        %1408 = vst [vmem:[%s306 + $0xf0] sm:$0xff] %v1196
        %1409 = vst [vmem:[%s306 + $0xf8] sm:$0xff] %v1199
        %1410 = vst [vmem:[%s306 + $0x110] sm:$0xff] %v1204
        %1411 = vst [vmem:[%s306 + $0x118] sm:$0xff] %v1207
        %1412 = vst [vmem:[%s306 + $0x130] sm:$0xff] %v1212
        %1413 = vst [vmem:[%s306 + $0x138] sm:$0xff] %v1215
        %1414 = vst [vmem:[%s306 + $0x150] sm:$0xff] %v1220
        %1415 = vst [vmem:[%s306 + $0x158] sm:$0xff] %v1223
        %1416 = vst [vmem:[%s306 + $0x170] sm:$0xff] %v1228
        %1417 = vst [vmem:[%s306 + $0x178] sm:$0xff] %v1231
        %1418 = vst [vmem:[%s306 + $0x190] sm:$0xff] %v1236
        %1419 = vst [vmem:[%s306 + $0x198] sm:$0xff] %v1239
        %1420 = vst [vmem:[%s306 + $0x1b0] sm:$0xff] %v1244
        %1421 = vst [vmem:[%s306 + $0x1b8] sm:$0xff] %v1247
        %1422 = vst [vmem:[%s306 + $0x1d0] sm:$0xff] %v1252
        %1423 = vst [vmem:[%s306 + $0x1d8] sm:$0xff] %v1255
        %1424 = vst [vmem:[%s306 + $0x1f0] sm:$0xff] %v1260
        %1425 = vst [vmem:[%s306 + $0x1f8] sm:$0xff] %v1263
        %1426 = vst [vmem:[%s306 + $0x210] sm:$0xff] %v1268
        %1427 = vst [vmem:[%s306 + $0x218] sm:$0xff] %v1271
        %1428 = vst [vmem:[%s306 + $0x230] sm:$0xff] %v1276
        %1429 = vst [vmem:[%s306 + $0x238] sm:$0xff] %v1279
        %1430 = vst [vmem:[%s306 + $0x250] sm:$0xff] %v1284
        %1431 = vst [vmem:[%s306 + $0x258] sm:$0xff] %v1287
        %1432 = vst [vmem:[%s306 + $0x270] sm:$0xff] %v1292
        %1433 = vst [vmem:[%s306 + $0x278] sm:$0xff] %v1295
        %1434 = vst [vmem:[%s306 + $0x290] sm:$0xff] %v1300
        %1435 = vst [vmem:[%s306 + $0x298] sm:$0xff] %v1303
        %1436 = vst [vmem:[%s306 + $0x2b0] sm:$0xff] %v1308
        %1437 = vst [vmem:[%s306 + $0x2b8] sm:$0xff] %v1311
        %1438 = vst [vmem:[%s306 + $0x2d0] sm:$0xff] %v1316
        %1439 = vst [vmem:[%s306 + $0x2d8] sm:$0xff] %v1319
        %1440 = vst [vmem:[%s306 + $0x2f0] sm:$0xff] %v1324
        %1441 = vst [vmem:[%s306 + $0x2f8] sm:$0xff] %v1327
        %1442 = vst [vmem:[%s306 + $0x310] sm:$0xff] %v1332
        %1443 = vst [vmem:[%s306 + $0x318] sm:$0xff] %v1335
        %1444 = vst [vmem:[%s306 + $0x330] sm:$0xff] %v1340
        %1445 = vst [vmem:[%s306 + $0x338] sm:$0xff] %v1343
        %1446 = vst [vmem:[%s306 + $0x350] sm:$0xff] %v1348
        %1447 = vst [vmem:[%s306 + $0x358] sm:$0xff] %v1351
        %1448 = vst [vmem:[%s306 + $0x370] sm:$0xff] %v1356
        %1449 = vst [vmem:[%s306 + $0x378] sm:$0xff] %v1359
        %1450 = vst [vmem:[%s306 + $0x390] sm:$0xff] %v1364
        %1451 = vst [vmem:[%s306 + $0x398] sm:$0xff] %v1367
        %1452 = vst [vmem:[%s306 + $0x3b0] sm:$0xff] %v1372
        %1453 = vst [vmem:[%s306 + $0x3b8] sm:$0xff] %v1375
        %1454 = vst [vmem:[%s306 + $0x3d0] sm:$0xff] %v1380
        %1455 = vst [vmem:[%s306 + $0x3d8] sm:$0xff] %v1383
        %1456 = vst [vmem:[%s306 + $0x3f0] sm:$0xff] %v1388
        %1457 = vst [vmem:[%s306 + $0x3f8] sm:$0xff] %v1391
        %s1458 = sand.u32 %s191, 1
        %s1459 = scalar_lea.sflag [#allocation3], %s1458
        %s1460 = sand.u32 %s191, 1
        %s1461 = smul.addr %s1460, 1024
        %s1462 = scalar_lea.vmem [#allocation2], %s1461
        // Predicated region
        $region49: #{tpu_custom_call.1} parent=47 // pred_check
          %p1463 = pneg %p201
        $region50: #{tpu_custom_call.1} parent=47 // pred_check_branch
          %1465 = sbr.rel (%p1463) target = $region52
        $region51: #{tpu_custom_call.1} parent=47 // pred_region
          %s1466 = smul.u32 32, %s21
          %s1468 = ssub.s32 16384, 16384
          %1469 = vsyncadd %s1459, %s1468
          %s1470 = smul.addr %s1466, 4
          %s1471 = smul.addr %s1470, 128
          %s1472 = scalar_lea.hbm %s7, %s1471
          %s1473 = sshll.u32 %s1462, 4
          %s1474 = int_to_ptr.vmem [resolvable:$true] %s1473
          %1479 = dma.vmem_to_hbm [thread:$0]  %s1474, 16384, %s1472, %s1459, 128, 128, 8
        $region52: #{tpu_custom_call.1} parent=47 // pred_fallthru
          _
      $region48: #{tpu_custom_call.1} parent=5 // pred_fallthru
        _
      %p1480 = scmp.le.s32.totalorder 2, %s16
      // Predicated region
      $region53: #{tpu_custom_call.1} parent=5 // pred_check
        %p1481 = pneg %p1480
      $region54: #{tpu_custom_call.1} parent=5 // pred_check_branch
        %1483 = sbr.rel (%p1481) target = $region56
      $region55: #{tpu_custom_call.1} parent=5 // pred_region
        %s1484 = ssub.s32 %s16, 2
        // Predicated region
        $region57: #{tpu_custom_call.1} parent=55 // pred_check
          %p1485 = pneg %p207
        $region58: #{tpu_custom_call.1} parent=55 // pred_check_branch
          %1487 = sbr.rel (%p1485) target = $region60
        $region59: #{tpu_custom_call.1} parent=55 // pred_region
          %s1488 = sand.u32 %s192, 1
          %s1489 = scalar_lea.sflag [#allocation3], %s1488
          %s1490 = sand.u32 %s192, 1
          %s1491 = smul.addr %s1490, 1024
          %s1492 = scalar_lea.vmem [#allocation2], %s1491
          %1493 = dma.done %s1489, 16384
        $region60: #{tpu_custom_call.1} parent=55 // pred_fallthru
          _
      $region56: #{tpu_custom_call.1} parent=5 // pred_fallthru
        _
    $region6: #{tpu_custom_call.1} parent=1 // loop_footer
      %s20 = sadd.s32 1, %s16
    $region7: #{tpu_custom_call.1} parent=1 // loop_footer_branch
      %15 = sbr.rel target = $region3
    $region8: #{tpu_custom_call.1} parent=1 // loop_exit
      _
    %1494 = vsyncpa [#allocation3], 1
    %s1495 = scalar_lea.sflag [#allocation3], 1
    %1496 = vsyncpa %s1495, 1

</llo_original>
